<compile_context>
chip_gen: v5e
topology: v5e:2x2
jax: 0.10.0
libtpu: 0.0.40
codegen_flags: <defaults>
</compile_context>

<pallas_src>
import functools

import jax
import jax.numpy as jnp
from jax.experimental import pallas as pl
from jax.experimental.pallas import tpu as pltpu

EPS = 1e-5  # nn.BatchNorm2d default eps


# ---------------------------------------------------------------------------
# Fused Pallas kernel: relu(bn(conv1(x))) -> relu(bn(conv2(.)))
# ---------------------------------------------------------------------------
def tinyconv_kernel(x_ref, mats_ref, aff_ref, out_ref, *, N, H, W, C):
    # x_ref:    (N, H, W*C)       channels-last rows, columns = (w, c)
    # mats_ref: (19, W*C, W*C)    [0:9] layer-1 taps B_{dy,dx},
    #                             [9:18] layer-2 taps, [18] = kron(1, I)/M
    # aff_ref:  (4, W*C)          rows = gamma1, beta1, gamma2, beta2 (tiled)
    # out_ref:  (N, H, W*C)
    WC = W * C

    # H-shift selection matrices: (T_dy @ a)[h, :] = a[h + dy - 1, :] with
    # zero rows at the boundary (== the conv's zero padding along H).
    row = jax.lax.broadcasted_iota(jnp.int32, (H, H), 0)
    col = jax.lax.broadcasted_iota(jnp.int32, (H, H), 1)
    tmats = [(col == row + (dy - 1)).astype(jnp.float32) for dy in range(3)]

    def conv3x3(a_imgs, layer):
        # 3x3 "same" conv (bias omitted: it cancels against the BN batch mean).
        outs = []
        for a in a_imgs:                                   # static loop, N small
            acc = jnp.zeros((H, WC), jnp.float32)
            for dy in range(3):
                ash = jnp.dot(tmats[dy], a, preferred_element_type=jnp.float32)
                for dx in range(3):
                    acc = acc + jnp.dot(
                        ash, mats_ref[9 * layer + 3 * dy + dx],
                        preferred_element_type=jnp.float32)
            outs.append(acc)
        return outs

    def bn_relu(accs, layer):
        # Training-mode BatchNorm2d: batch stats over (N,H,W), biased variance,
        # eps = 1e-5, affine, then ReLU.  Single traversal for sum / sumsq.
        s = jnp.zeros((1, WC), jnp.float32)
        ss = jnp.zeros((1, WC), jnp.float32)
        for a in accs:
            s = s + jnp.sum(a, axis=0, keepdims=True)
            ss = ss + jnp.sum(a * a, axis=0, keepdims=True)
        # mats_ref[18] = kron(ones(W,W), eye(C)) / (N*H*W): per-channel mean /
        # E[y^2], broadcast back over the (w, c) column layout in one matmul.
        mean = jnp.dot(s, mats_ref[18], preferred_element_type=jnp.float32)
        ex2 = jnp.dot(ss, mats_ref[18], preferred_element_type=jnp.float32)
        var = ex2 - mean * mean
        gamma = aff_ref[2 * layer:2 * layer + 1, :]
        beta = aff_ref[2 * layer + 1:2 * layer + 2, :]
        scale = gamma * jax.lax.rsqrt(var + EPS)
        shift = beta - mean * scale
        return [jnp.maximum(a * scale + shift, 0.0) for a in accs]

    x_imgs = [x_ref[n] for n in range(N)]
    y1 = bn_relu(conv3x3(x_imgs, 0), 0)      # stays resident in VMEM/vregs
    y2 = bn_relu(conv3x3(y1, 1), 1)
    for n in range(N):
        out_ref[n] = y2[n]


# ---------------------------------------------------------------------------
# Parameter packing (tiny arrays; runs once under jit)
# ---------------------------------------------------------------------------
def _build_params(W1, g1, be1, W2, g2, be2, *, N, H, Wd, C):
    WC = Wd * C
    M = N * H * Wd

    def taps(w_oihw):
        # (O, I, 3, 3) -> per-tap block matrices B_{dy,dx} = kron(S_dx, w_tap)
        wt = jnp.transpose(w_oihw, (2, 3, 1, 0)).astype(jnp.float32)  # (dy,dx,ci,co)
        ar = jnp.arange(Wd)
        # S_dx[w1, w2] = 1 iff w1 == w2 + dx - 1  (W shift with zero boundary)
        S = jnp.stack(
            [(ar[:, None] == ar[None, :] + (dx - 1)).astype(jnp.float32)
             for dx in range(3)], axis=0)                             # (3, W, W)
        B = jnp.einsum('xpq,yxio->yxpiqo', S, wt).reshape(9, WC, WC)
        return B

    P = (jnp.kron(jnp.ones((Wd, Wd), jnp.float32),
                  jnp.eye(C, dtype=jnp.float32)) / float(M))          # (WC, WC)
    mats = jnp.concatenate([taps(W1), taps(W2), P[None]], axis=0)     # (19,WC,WC)
    aff = jnp.stack([jnp.tile(g1, Wd), jnp.tile(be1, Wd),
                     jnp.tile(g2, Wd), jnp.tile(be2, Wd)], axis=0)    # (4, WC)
    return mats, aff


# ---------------------------------------------------------------------------
# Forward wrapper (keeps the module's NCHW interface)
# ---------------------------------------------------------------------------
@jax.jit
def tinyconv_forward(x_nchw, W1, g1, be1, W2, g2, be2):
    N, C, H, Wd = x_nchw.shape
    WC = Wd * C
    mats, aff = _build_params(W1, g1, be1, W2, g2, be2, N=N, H=H, Wd=Wd, C=C)

    # NCHW -> (N, H, W*C): the kernel's channels-last lane layout.
    x2d = jnp.transpose(x_nchw, (0, 2, 3, 1)).reshape(N, H, WC)

    kern = functools.partial(tinyconv_kernel, N=N, H=H, W=Wd, C=C)
    y = pl.pallas_call(
        kern,
        out_shape=jax.ShapeDtypeStruct((N, H, WC), jnp.float32),
        in_specs=[pl.BlockSpec(memory_space=pltpu.MemorySpace.VMEM)] * 3,
        out_specs=pl.BlockSpec(memory_space=pltpu.MemorySpace.VMEM),
    )(x2d, mats, aff)

    return jnp.transpose(y.reshape(N, H, Wd, C), (0, 3, 1, 2))        # -> NCHW


# ---------------------------------------------------------------------------
# Pure-JAX reference (mirrors the PyTorch forward in training mode, WITH bias)
# ---------------------------------------------------------------------------
def ref_forward(x, W1, b1, g1, be1, W2, b2, g2, be2):
    def conv(x, Wc, b):
        y = jax.lax.conv_general_dilated(
            x, Wc, window_strides=(1, 1), padding=((1, 1), (1, 1)),
            dimension_numbers=("NCHW", "OIHW", "NCHW"),
            precision=jax.lax.Precision.HIGHEST)
        return y + b.reshape(1, -1, 1, 1)

    def bn_relu(y, g, be):
        m = jnp.mean(y, axis=(0, 2, 3), keepdims=True)
        v = jnp.mean((y - m) ** 2, axis=(0, 2, 3), keepdims=True)
        yhat = (y - m) * jax.lax.rsqrt(v + EPS)
        return jnp.maximum(
            yhat * g.reshape(1, -1, 1, 1) + be.reshape(1, -1, 1, 1), 0.0)

    return bn_relu(conv(bn_relu(conv(x, W1, b1), g1, be1), W2, b2), g2, be2)


# ---------------------------------------------------------------------------
if __name__ == "__main__":
    key = jax.random.PRNGKey(0)
    kx, kp = jax.random.split(key)

    N, C, H, Wd = 2, 4, 16, 16
    x = jax.random.normal(kx, (N, C, H, Wd), jnp.float32)

    # Deterministic synthetic parameters (shapes match TinyConv.__init__).
    ks = jax.random.split(kp, 8)
    W1 = 0.3 * jax.random.normal(ks[0], (C, C, 3, 3), jnp.float32)   # conv1.weight
    b1 = 0.1 * jax.random.normal(ks[1], (C,), jnp.float32)           # conv1.bias
    g1 = 1.0 + 0.1 * jax.random.normal(ks[2], (C,), jnp.float32)     # norm1.weight
    be1 = 0.1 * jax.random.normal(ks[3], (C,), jnp.float32)          # norm1.bias
    W2 = 0.3 * jax.random.normal(ks[4], (C, C, 3, 3), jnp.float32)   # conv2.weight
    b2 = 0.1 * jax.random.normal(ks[5], (C,), jnp.float32)           # conv2.bias
    g2 = 1.0 + 0.1 * jax.random.normal(ks[6], (C,), jnp.float32)     # norm2.weight
    be2 = 0.1 * jax.random.normal(ks[7], (C,), jnp.float32)          # norm2.bias

    # Kernel path drops b1/b2 on purpose: training-mode BN subtracts the batch
    # mean right after the conv, so the per-channel bias cancels exactly.
    out = tinyconv_forward(x, W1, g1, be1, W2, g2, be2)
    out = jax.block_until_ready(out)

    ref = ref_forward(x, W1, b1, g1, be1, W2, b2, g2, be2)
    assert out.shape == (N, C, H, Wd) and out.dtype == jnp.float32
    max_err = float(jnp.max(jnp.abs(out - ref)))
    assert jnp.allclose(out, ref, atol=5e-4, rtol=5e-4), f"max abs err = {max_err}"

    print("KERNEL_OK")
</pallas_src>

<mosaic_0001>
module attributes {stable_mosaic.version = 11 : i64} {
  func.func @tinyconv_kernel(%arg0: memref<2x16x64xf32, #tpu.memory_space<vmem>>, %arg1: memref<19x64x64xf32, #tpu.memory_space<vmem>>, %arg2: memref<4x64xf32, #tpu.memory_space<vmem>>, %arg3: memref<2x16x64xf32, #tpu.memory_space<vmem>>) attributes {dimension_semantics = [], scalar_prefetch = 0 : i64, scratch_operands = 0 : i64, tpu.core_type = #tpu.core_type<tc>} {
    %0 = tpu.iota {dimensions = array<i32: 0>} : vector<16x16xi32>
    %1 = tpu.iota {dimensions = array<i32: 1>} : vector<16x16xi32>
    %c-1_i32 = arith.constant -1 : i32
    %2 = vector.broadcast %c-1_i32 : i32 to vector<16x16xi32>
    %3 = arith.addi %0, %2 : vector<16x16xi32>
    %4 = arith.cmpi eq, %1, %3 : vector<16x16xi32>
    %5 = arith.extui %4 : vector<16x16xi1> to vector<16x16xi32>
    %6 = arith.sitofp %5 : vector<16x16xi32> to vector<16x16xf32>
    %c0_i32 = arith.constant 0 : i32
    %7 = vector.broadcast %c0_i32 : i32 to vector<16x16xi32>
    %8 = arith.addi %0, %7 : vector<16x16xi32>
    %9 = arith.cmpi eq, %1, %8 : vector<16x16xi32>
    %10 = arith.extui %9 : vector<16x16xi1> to vector<16x16xi32>
    %11 = arith.sitofp %10 : vector<16x16xi32> to vector<16x16xf32>
    %c1_i32 = arith.constant 1 : i32
    %12 = vector.broadcast %c1_i32 : i32 to vector<16x16xi32>
    %13 = arith.addi %0, %12 : vector<16x16xi32>
    %14 = arith.cmpi eq, %1, %13 : vector<16x16xi32>
    %15 = arith.extui %14 : vector<16x16xi1> to vector<16x16xi32>
    %16 = arith.sitofp %15 : vector<16x16xi32> to vector<16x16xf32>
    %c0 = arith.constant 0 : index
    %c0_0 = arith.constant 0 : index
    %c0_1 = arith.constant 0 : index
    %17 = vector.load %arg0[%c0, %c0_0, %c0_1] : memref<2x16x64xf32, #tpu.memory_space<vmem>>, vector<1x16x64xf32>
    %18 = vector.shape_cast %17 : vector<1x16x64xf32> to vector<16x64xf32>
    %c1 = arith.constant 1 : index
    %c0_2 = arith.constant 0 : index
    %c0_3 = arith.constant 0 : index
    %19 = vector.load %arg0[%c1, %c0_2, %c0_3] : memref<2x16x64xf32, #tpu.memory_space<vmem>>, vector<1x16x64xf32>
    %20 = vector.shape_cast %19 : vector<1x16x64xf32> to vector<16x64xf32>
    %cst = arith.constant 0.000000e+00 : f32
    %21 = vector.broadcast %cst : f32 to vector<16x64xf32>
    %cst_4 = arith.constant dense<0.000000e+00> : vector<16x64xf32>
    %22 = tpu.matmul %6, %18, %cst_4 {dimension_numbers = #tpu.dot_dimension_numbers<[1], [0], [0], [1], [0, 0, 1, 1], [], []>} : vector<16x16xf32>, vector<16x64xf32>, vector<16x64xf32> -> vector<16x64xf32>
    %c0_5 = arith.constant 0 : index
    %c0_6 = arith.constant 0 : index
    %c0_7 = arith.constant 0 : index
    %23 = vector.load %arg1[%c0_5, %c0_6, %c0_7] : memref<19x64x64xf32, #tpu.memory_space<vmem>>, vector<1x64x64xf32>
    %24 = vector.shape_cast %23 : vector<1x64x64xf32> to vector<64x64xf32>
    %cst_8 = arith.constant dense<0.000000e+00> : vector<16x64xf32>
    %25 = tpu.matmul %22, %24, %cst_8 {dimension_numbers = #tpu.dot_dimension_numbers<[1], [0], [0], [1], [0, 0, 1, 1], [], []>} : vector<16x64xf32>, vector<64x64xf32>, vector<16x64xf32> -> vector<16x64xf32>
    %26 = arith.addf %21, %25 : vector<16x64xf32>
    %c1_9 = arith.constant 1 : index
    %c0_10 = arith.constant 0 : index
    %c0_11 = arith.constant 0 : index
    %27 = vector.load %arg1[%c1_9, %c0_10, %c0_11] : memref<19x64x64xf32, #tpu.memory_space<vmem>>, vector<1x64x64xf32>
    %28 = vector.shape_cast %27 : vector<1x64x64xf32> to vector<64x64xf32>
    %cst_12 = arith.constant dense<0.000000e+00> : vector<16x64xf32>
    %29 = tpu.matmul %22, %28, %cst_12 {dimension_numbers = #tpu.dot_dimension_numbers<[1], [0], [0], [1], [0, 0, 1, 1], [], []>} : vector<16x64xf32>, vector<64x64xf32>, vector<16x64xf32> -> vector<16x64xf32>
    %30 = arith.addf %26, %29 : vector<16x64xf32>
    %c2 = arith.constant 2 : index
    %c0_13 = arith.constant 0 : index
    %c0_14 = arith.constant 0 : index
    %31 = vector.load %arg1[%c2, %c0_13, %c0_14] : memref<19x64x64xf32, #tpu.memory_space<vmem>>, vector<1x64x64xf32>
    %32 = vector.shape_cast %31 : vector<1x64x64xf32> to vector<64x64xf32>
    %cst_15 = arith.constant dense<0.000000e+00> : vector<16x64xf32>
    %33 = tpu.matmul %22, %32, %cst_15 {dimension_numbers = #tpu.dot_dimension_numbers<[1], [0], [0], [1], [0, 0, 1, 1], [], []>} : vector<16x64xf32>, vector<64x64xf32>, vector<16x64xf32> -> vector<16x64xf32>
    %34 = arith.addf %30, %33 : vector<16x64xf32>
    %cst_16 = arith.constant dense<0.000000e+00> : vector<16x64xf32>
    %35 = tpu.matmul %11, %18, %cst_16 {dimension_numbers = #tpu.dot_dimension_numbers<[1], [0], [0], [1], [0, 0, 1, 1], [], []>} : vector<16x16xf32>, vector<16x64xf32>, vector<16x64xf32> -> vector<16x64xf32>
    %c3 = arith.constant 3 : index
    %c0_17 = arith.constant 0 : index
    %c0_18 = arith.constant 0 : index
    %36 = vector.load %arg1[%c3, %c0_17, %c0_18] : memref<19x64x64xf32, #tpu.memory_space<vmem>>, vector<1x64x64xf32>
    %37 = vector.shape_cast %36 : vector<1x64x64xf32> to vector<64x64xf32>
    %cst_19 = arith.constant dense<0.000000e+00> : vector<16x64xf32>
    %38 = tpu.matmul %35, %37, %cst_19 {dimension_numbers = #tpu.dot_dimension_numbers<[1], [0], [0], [1], [0, 0, 1, 1], [], []>} : vector<16x64xf32>, vector<64x64xf32>, vector<16x64xf32> -> vector<16x64xf32>
    %39 = arith.addf %34, %38 : vector<16x64xf32>
    %c4 = arith.constant 4 : index
    %c0_20 = arith.constant 0 : index
    %c0_21 = arith.constant 0 : index
    %40 = vector.load %arg1[%c4, %c0_20, %c0_21] : memref<19x64x64xf32, #tpu.memory_space<vmem>>, vector<1x64x64xf32>
    %41 = vector.shape_cast %40 : vector<1x64x64xf32> to vector<64x64xf32>
    %cst_22 = arith.constant dense<0.000000e+00> : vector<16x64xf32>
    %42 = tpu.matmul %35, %41, %cst_22 {dimension_numbers = #tpu.dot_dimension_numbers<[1], [0], [0], [1], [0, 0, 1, 1], [], []>} : vector<16x64xf32>, vector<64x64xf32>, vector<16x64xf32> -> vector<16x64xf32>
    %43 = arith.addf %39, %42 : vector<16x64xf32>
    %c5 = arith.constant 5 : index
    %c0_23 = arith.constant 0 : index
    %c0_24 = arith.constant 0 : index
    %44 = vector.load %arg1[%c5, %c0_23, %c0_24] : memref<19x64x64xf32, #tpu.memory_space<vmem>>, vector<1x64x64xf32>
    %45 = vector.shape_cast %44 : vector<1x64x64xf32> to vector<64x64xf32>
    %cst_25 = arith.constant dense<0.000000e+00> : vector<16x64xf32>
    %46 = tpu.matmul %35, %45, %cst_25 {dimension_numbers = #tpu.dot_dimension_numbers<[1], [0], [0], [1], [0, 0, 1, 1], [], []>} : vector<16x64xf32>, vector<64x64xf32>, vector<16x64xf32> -> vector<16x64xf32>
    %47 = arith.addf %43, %46 : vector<16x64xf32>
    %cst_26 = arith.constant dense<0.000000e+00> : vector<16x64xf32>
    %48 = tpu.matmul %16, %18, %cst_26 {dimension_numbers = #tpu.dot_dimension_numbers<[1], [0], [0], [1], [0, 0, 1, 1], [], []>} : vector<16x16xf32>, vector<16x64xf32>, vector<16x64xf32> -> vector<16x64xf32>
    %c6 = arith.constant 6 : index
    %c0_27 = arith.constant 0 : index
    %c0_28 = arith.constant 0 : index
    %49 = vector.load %arg1[%c6, %c0_27, %c0_28] : memref<19x64x64xf32, #tpu.memory_space<vmem>>, vector<1x64x64xf32>
    %50 = vector.shape_cast %49 : vector<1x64x64xf32> to vector<64x64xf32>
    %cst_29 = arith.constant dense<0.000000e+00> : vector<16x64xf32>
    %51 = tpu.matmul %48, %50, %cst_29 {dimension_numbers = #tpu.dot_dimension_numbers<[1], [0], [0], [1], [0, 0, 1, 1], [], []>} : vector<16x64xf32>, vector<64x64xf32>, vector<16x64xf32> -> vector<16x64xf32>
    %52 = arith.addf %47, %51 : vector<16x64xf32>
    %c7 = arith.constant 7 : index
    %c0_30 = arith.constant 0 : index
    %c0_31 = arith.constant 0 : index
    %53 = vector.load %arg1[%c7, %c0_30, %c0_31] : memref<19x64x64xf32, #tpu.memory_space<vmem>>, vector<1x64x64xf32>
    %54 = vector.shape_cast %53 : vector<1x64x64xf32> to vector<64x64xf32>
    %cst_32 = arith.constant dense<0.000000e+00> : vector<16x64xf32>
    %55 = tpu.matmul %48, %54, %cst_32 {dimension_numbers = #tpu.dot_dimension_numbers<[1], [0], [0], [1], [0, 0, 1, 1], [], []>} : vector<16x64xf32>, vector<64x64xf32>, vector<16x64xf32> -> vector<16x64xf32>
    %56 = arith.addf %52, %55 : vector<16x64xf32>
    %c8 = arith.constant 8 : index
    %c0_33 = arith.constant 0 : index
    %c0_34 = arith.constant 0 : index
    %57 = vector.load %arg1[%c8, %c0_33, %c0_34] : memref<19x64x64xf32, #tpu.memory_space<vmem>>, vector<1x64x64xf32>
    %58 = vector.shape_cast %57 : vector<1x64x64xf32> to vector<64x64xf32>
    %cst_35 = arith.constant dense<0.000000e+00> : vector<16x64xf32>
    %59 = tpu.matmul %48, %58, %cst_35 {dimension_numbers = #tpu.dot_dimension_numbers<[1], [0], [0], [1], [0, 0, 1, 1], [], []>} : vector<16x64xf32>, vector<64x64xf32>, vector<16x64xf32> -> vector<16x64xf32>
    %60 = arith.addf %56, %59 : vector<16x64xf32>
    %cst_36 = arith.constant 0.000000e+00 : f32
    %61 = vector.broadcast %cst_36 : f32 to vector<16x64xf32>
    %cst_37 = arith.constant dense<0.000000e+00> : vector<16x64xf32>
    %62 = tpu.matmul %6, %20, %cst_37 {dimension_numbers = #tpu.dot_dimension_numbers<[1], [0], [0], [1], [0, 0, 1, 1], [], []>} : vector<16x16xf32>, vector<16x64xf32>, vector<16x64xf32> -> vector<16x64xf32>
    %c0_38 = arith.constant 0 : index
    %c0_39 = arith.constant 0 : index
    %c0_40 = arith.constant 0 : index
    %63 = vector.load %arg1[%c0_38, %c0_39, %c0_40] : memref<19x64x64xf32, #tpu.memory_space<vmem>>, vector<1x64x64xf32>
    %64 = vector.shape_cast %63 : vector<1x64x64xf32> to vector<64x64xf32>
    %cst_41 = arith.constant dense<0.000000e+00> : vector<16x64xf32>
    %65 = tpu.matmul %62, %64, %cst_41 {dimension_numbers = #tpu.dot_dimension_numbers<[1], [0], [0], [1], [0, 0, 1, 1], [], []>} : vector<16x64xf32>, vector<64x64xf32>, vector<16x64xf32> -> vector<16x64xf32>
    %66 = arith.addf %61, %65 : vector<16x64xf32>
    %c1_42 = arith.constant 1 : index
    %c0_43 = arith.constant 0 : index
    %c0_44 = arith.constant 0 : index
    %67 = vector.load %arg1[%c1_42, %c0_43, %c0_44] : memref<19x64x64xf32, #tpu.memory_space<vmem>>, vector<1x64x64xf32>
    %68 = vector.shape_cast %67 : vector<1x64x64xf32> to vector<64x64xf32>
    %cst_45 = arith.constant dense<0.000000e+00> : vector<16x64xf32>
    %69 = tpu.matmul %62, %68, %cst_45 {dimension_numbers = #tpu.dot_dimension_numbers<[1], [0], [0], [1], [0, 0, 1, 1], [], []>} : vector<16x64xf32>, vector<64x64xf32>, vector<16x64xf32> -> vector<16x64xf32>
    %70 = arith.addf %66, %69 : vector<16x64xf32>
    %c2_46 = arith.constant 2 : index
    %c0_47 = arith.constant 0 : index
    %c0_48 = arith.constant 0 : index
    %71 = vector.load %arg1[%c2_46, %c0_47, %c0_48] : memref<19x64x64xf32, #tpu.memory_space<vmem>>, vector<1x64x64xf32>
    %72 = vector.shape_cast %71 : vector<1x64x64xf32> to vector<64x64xf32>
    %cst_49 = arith.constant dense<0.000000e+00> : vector<16x64xf32>
    %73 = tpu.matmul %62, %72, %cst_49 {dimension_numbers = #tpu.dot_dimension_numbers<[1], [0], [0], [1], [0, 0, 1, 1], [], []>} : vector<16x64xf32>, vector<64x64xf32>, vector<16x64xf32> -> vector<16x64xf32>
    %74 = arith.addf %70, %73 : vector<16x64xf32>
    %cst_50 = arith.constant dense<0.000000e+00> : vector<16x64xf32>
    %75 = tpu.matmul %11, %20, %cst_50 {dimension_numbers = #tpu.dot_dimension_numbers<[1], [0], [0], [1], [0, 0, 1, 1], [], []>} : vector<16x16xf32>, vector<16x64xf32>, vector<16x64xf32> -> vector<16x64xf32>
    %c3_51 = arith.constant 3 : index
    %c0_52 = arith.constant 0 : index
    %c0_53 = arith.constant 0 : index
    %76 = vector.load %arg1[%c3_51, %c0_52, %c0_53] : memref<19x64x64xf32, #tpu.memory_space<vmem>>, vector<1x64x64xf32>
    %77 = vector.shape_cast %76 : vector<1x64x64xf32> to vector<64x64xf32>
    %cst_54 = arith.constant dense<0.000000e+00> : vector<16x64xf32>
    %78 = tpu.matmul %75, %77, %cst_54 {dimension_numbers = #tpu.dot_dimension_numbers<[1], [0], [0], [1], [0, 0, 1, 1], [], []>} : vector<16x64xf32>, vector<64x64xf32>, vector<16x64xf32> -> vector<16x64xf32>
    %79 = arith.addf %74, %78 : vector<16x64xf32>
    %c4_55 = arith.constant 4 : index
    %c0_56 = arith.constant 0 : index
    %c0_57 = arith.constant 0 : index
    %80 = vector.load %arg1[%c4_55, %c0_56, %c0_57] : memref<19x64x64xf32, #tpu.memory_space<vmem>>, vector<1x64x64xf32>
    %81 = vector.shape_cast %80 : vector<1x64x64xf32> to vector<64x64xf32>
    %cst_58 = arith.constant dense<0.000000e+00> : vector<16x64xf32>
    %82 = tpu.matmul %75, %81, %cst_58 {dimension_numbers = #tpu.dot_dimension_numbers<[1], [0], [0], [1], [0, 0, 1, 1], [], []>} : vector<16x64xf32>, vector<64x64xf32>, vector<16x64xf32> -> vector<16x64xf32>
    %83 = arith.addf %79, %82 : vector<16x64xf32>
    %c5_59 = arith.constant 5 : index
    %c0_60 = arith.constant 0 : index
    %c0_61 = arith.constant 0 : index
    %84 = vector.load %arg1[%c5_59, %c0_60, %c0_61] : memref<19x64x64xf32, #tpu.memory_space<vmem>>, vector<1x64x64xf32>
    %85 = vector.shape_cast %84 : vector<1x64x64xf32> to vector<64x64xf32>
    %cst_62 = arith.constant dense<0.000000e+00> : vector<16x64xf32>
    %86 = tpu.matmul %75, %85, %cst_62 {dimension_numbers = #tpu.dot_dimension_numbers<[1], [0], [0], [1], [0, 0, 1, 1], [], []>} : vector<16x64xf32>, vector<64x64xf32>, vector<16x64xf32> -> vector<16x64xf32>
    %87 = arith.addf %83, %86 : vector<16x64xf32>
    %cst_63 = arith.constant dense<0.000000e+00> : vector<16x64xf32>
    %88 = tpu.matmul %16, %20, %cst_63 {dimension_numbers = #tpu.dot_dimension_numbers<[1], [0], [0], [1], [0, 0, 1, 1], [], []>} : vector<16x16xf32>, vector<16x64xf32>, vector<16x64xf32> -> vector<16x64xf32>
    %c6_64 = arith.constant 6 : index
    %c0_65 = arith.constant 0 : index
    %c0_66 = arith.constant 0 : index
    %89 = vector.load %arg1[%c6_64, %c0_65, %c0_66] : memref<19x64x64xf32, #tpu.memory_space<vmem>>, vector<1x64x64xf32>
    %90 = vector.shape_cast %89 : vector<1x64x64xf32> to vector<64x64xf32>
    %cst_67 = arith.constant dense<0.000000e+00> : vector<16x64xf32>
    %91 = tpu.matmul %88, %90, %cst_67 {dimension_numbers = #tpu.dot_dimension_numbers<[1], [0], [0], [1], [0, 0, 1, 1], [], []>} : vector<16x64xf32>, vector<64x64xf32>, vector<16x64xf32> -> vector<16x64xf32>
    %92 = arith.addf %87, %91 : vector<16x64xf32>
    %c7_68 = arith.constant 7 : index
    %c0_69 = arith.constant 0 : index
    %c0_70 = arith.constant 0 : index
    %93 = vector.load %arg1[%c7_68, %c0_69, %c0_70] : memref<19x64x64xf32, #tpu.memory_space<vmem>>, vector<1x64x64xf32>
    %94 = vector.shape_cast %93 : vector<1x64x64xf32> to vector<64x64xf32>
    %cst_71 = arith.constant dense<0.000000e+00> : vector<16x64xf32>
    %95 = tpu.matmul %88, %94, %cst_71 {dimension_numbers = #tpu.dot_dimension_numbers<[1], [0], [0], [1], [0, 0, 1, 1], [], []>} : vector<16x64xf32>, vector<64x64xf32>, vector<16x64xf32> -> vector<16x64xf32>
    %96 = arith.addf %92, %95 : vector<16x64xf32>
    %c8_72 = arith.constant 8 : index
    %c0_73 = arith.constant 0 : index
    %c0_74 = arith.constant 0 : index
    %97 = vector.load %arg1[%c8_72, %c0_73, %c0_74] : memref<19x64x64xf32, #tpu.memory_space<vmem>>, vector<1x64x64xf32>
    %98 = vector.shape_cast %97 : vector<1x64x64xf32> to vector<64x64xf32>
    %cst_75 = arith.constant dense<0.000000e+00> : vector<16x64xf32>
    %99 = tpu.matmul %88, %98, %cst_75 {dimension_numbers = #tpu.dot_dimension_numbers<[1], [0], [0], [1], [0, 0, 1, 1], [], []>} : vector<16x64xf32>, vector<64x64xf32>, vector<16x64xf32> -> vector<16x64xf32>
    %100 = arith.addf %96, %99 : vector<16x64xf32>
    %cst_76 = arith.constant 0.000000e+00 : f32
    %101 = vector.broadcast %cst_76 : f32 to vector<1x64xf32>
    %cst_77 = arith.constant 0.000000e+00 : f32
    %102 = vector.broadcast %cst_77 : f32 to vector<1x64xf32>
    %cst_78 = arith.constant dense<0.000000e+00> : vector<64xf32>
    %103 = vector.multi_reduction <add>, %60, %cst_78 [0] : vector<16x64xf32> to vector<64xf32>
    %104 = vector.shape_cast %103 : vector<64xf32> to vector<1x64xf32>
    %105 = arith.addf %101, %104 : vector<1x64xf32>
    %106 = arith.mulf %60, %60 : vector<16x64xf32>
    %cst_79 = arith.constant dense<0.000000e+00> : vector<64xf32>
    %107 = vector.multi_reduction <add>, %106, %cst_79 [0] : vector<16x64xf32> to vector<64xf32>
    %108 = vector.shape_cast %107 : vector<64xf32> to vector<1x64xf32>
    %109 = arith.addf %102, %108 : vector<1x64xf32>
    %cst_80 = arith.constant dense<0.000000e+00> : vector<64xf32>
    %110 = vector.multi_reduction <add>, %100, %cst_80 [0] : vector<16x64xf32> to vector<64xf32>
    %111 = vector.shape_cast %110 : vector<64xf32> to vector<1x64xf32>
    %112 = arith.addf %105, %111 : vector<1x64xf32>
    %113 = arith.mulf %100, %100 : vector<16x64xf32>
    %cst_81 = arith.constant dense<0.000000e+00> : vector<64xf32>
    %114 = vector.multi_reduction <add>, %113, %cst_81 [0] : vector<16x64xf32> to vector<64xf32>
    %115 = vector.shape_cast %114 : vector<64xf32> to vector<1x64xf32>
    %116 = arith.addf %109, %115 : vector<1x64xf32>
    %c18 = arith.constant 18 : index
    %c0_82 = arith.constant 0 : index
    %c0_83 = arith.constant 0 : index
    %117 = vector.load %arg1[%c18, %c0_82, %c0_83] : memref<19x64x64xf32, #tpu.memory_space<vmem>>, vector<1x64x64xf32>
    %118 = vector.shape_cast %117 : vector<1x64x64xf32> to vector<64x64xf32>
    %cst_84 = arith.constant dense<0.000000e+00> : vector<1x64xf32>
    %119 = tpu.matmul %112, %118, %cst_84 {dimension_numbers = #tpu.dot_dimension_numbers<[1], [0], [0], [1], [0, 0, 1, 1], [], []>} : vector<1x64xf32>, vector<64x64xf32>, vector<1x64xf32> -> vector<1x64xf32>
    %c18_85 = arith.constant 18 : index
    %c0_86 = arith.constant 0 : index
    %c0_87 = arith.constant 0 : index
    %120 = vector.load %arg1[%c18_85, %c0_86, %c0_87] : memref<19x64x64xf32, #tpu.memory_space<vmem>>, vector<1x64x64xf32>
    %121 = vector.shape_cast %120 : vector<1x64x64xf32> to vector<64x64xf32>
    %cst_88 = arith.constant dense<0.000000e+00> : vector<1x64xf32>
    %122 = tpu.matmul %116, %121, %cst_88 {dimension_numbers = #tpu.dot_dimension_numbers<[1], [0], [0], [1], [0, 0, 1, 1], [], []>} : vector<1x64xf32>, vector<64x64xf32>, vector<1x64xf32> -> vector<1x64xf32>
    %123 = arith.mulf %119, %119 : vector<1x64xf32>
    %124 = arith.subf %122, %123 : vector<1x64xf32>
    %c0_89 = arith.constant 0 : index
    %c0_90 = arith.constant 0 : index
    %125 = vector.load %arg2[%c0_89, %c0_90] : memref<4x64xf32, #tpu.memory_space<vmem>>, vector<1x64xf32>
    %c1_91 = arith.constant 1 : index
    %c0_92 = arith.constant 0 : index
    %126 = vector.load %arg2[%c1_91, %c0_92] : memref<4x64xf32, #tpu.memory_space<vmem>>, vector<1x64xf32>
    %cst_93 = arith.constant 9.99999974E-6 : f32
    %127 = vector.broadcast %cst_93 : f32 to vector<1x64xf32>
    %128 = arith.addf %124, %127 : vector<1x64xf32>
    %129 = math.rsqrt %128 : vector<1x64xf32>
    %130 = arith.mulf %125, %129 : vector<1x64xf32>
    %131 = arith.mulf %119, %130 : vector<1x64xf32>
    %132 = arith.subf %126, %131 : vector<1x64xf32>
    %133 = vector.broadcast %130 : vector<1x64xf32> to vector<16x64xf32>
    %134 = arith.mulf %60, %133 : vector<16x64xf32>
    %135 = vector.broadcast %132 : vector<1x64xf32> to vector<16x64xf32>
    %136 = arith.addf %134, %135 : vector<16x64xf32>
    %cst_94 = arith.constant 0.000000e+00 : f32
    %137 = vector.broadcast %cst_94 : f32 to vector<16x64xf32>
    %138 = arith.maximumf %136, %137 : vector<16x64xf32>
    %139 = vector.broadcast %130 : vector<1x64xf32> to vector<16x64xf32>
    %140 = arith.mulf %100, %139 : vector<16x64xf32>
    %141 = vector.broadcast %132 : vector<1x64xf32> to vector<16x64xf32>
    %142 = arith.addf %140, %141 : vector<16x64xf32>
    %cst_95 = arith.constant 0.000000e+00 : f32
    %143 = vector.broadcast %cst_95 : f32 to vector<16x64xf32>
    %144 = arith.maximumf %142, %143 : vector<16x64xf32>
    %cst_96 = arith.constant 0.000000e+00 : f32
    %145 = vector.broadcast %cst_96 : f32 to vector<16x64xf32>
    %cst_97 = arith.constant dense<0.000000e+00> : vector<16x64xf32>
    %146 = tpu.matmul %6, %138, %cst_97 {dimension_numbers = #tpu.dot_dimension_numbers<[1], [0], [0], [1], [0, 0, 1, 1], [], []>} : vector<16x16xf32>, vector<16x64xf32>, vector<16x64xf32> -> vector<16x64xf32>
    %c9 = arith.constant 9 : index
    %c0_98 = arith.constant 0 : index
    %c0_99 = arith.constant 0 : index
    %147 = vector.load %arg1[%c9, %c0_98, %c0_99] : memref<19x64x64xf32, #tpu.memory_space<vmem>>, vector<1x64x64xf32>
    %148 = vector.shape_cast %147 : vector<1x64x64xf32> to vector<64x64xf32>
    %cst_100 = arith.constant dense<0.000000e+00> : vector<16x64xf32>
    %149 = tpu.matmul %146, %148, %cst_100 {dimension_numbers = #tpu.dot_dimension_numbers<[1], [0], [0], [1], [0, 0, 1, 1], [], []>} : vector<16x64xf32>, vector<64x64xf32>, vector<16x64xf32> -> vector<16x64xf32>
    %150 = arith.addf %145, %149 : vector<16x64xf32>
    %c10 = arith.constant 10 : index
    %c0_101 = arith.constant 0 : index
    %c0_102 = arith.constant 0 : index
    %151 = vector.load %arg1[%c10, %c0_101, %c0_102] : memref<19x64x64xf32, #tpu.memory_space<vmem>>, vector<1x64x64xf32>
    %152 = vector.shape_cast %151 : vector<1x64x64xf32> to vector<64x64xf32>
    %cst_103 = arith.constant dense<0.000000e+00> : vector<16x64xf32>
    %153 = tpu.matmul %146, %152, %cst_103 {dimension_numbers = #tpu.dot_dimension_numbers<[1], [0], [0], [1], [0, 0, 1, 1], [], []>} : vector<16x64xf32>, vector<64x64xf32>, vector<16x64xf32> -> vector<16x64xf32>
    %154 = arith.addf %150, %153 : vector<16x64xf32>
    %c11 = arith.constant 11 : index
    %c0_104 = arith.constant 0 : index
    %c0_105 = arith.constant 0 : index
    %155 = vector.load %arg1[%c11, %c0_104, %c0_105] : memref<19x64x64xf32, #tpu.memory_space<vmem>>, vector<1x64x64xf32>
    %156 = vector.shape_cast %155 : vector<1x64x64xf32> to vector<64x64xf32>
    %cst_106 = arith.constant dense<0.000000e+00> : vector<16x64xf32>
    %157 = tpu.matmul %146, %156, %cst_106 {dimension_numbers = #tpu.dot_dimension_numbers<[1], [0], [0], [1], [0, 0, 1, 1], [], []>} : vector<16x64xf32>, vector<64x64xf32>, vector<16x64xf32> -> vector<16x64xf32>
    %158 = arith.addf %154, %157 : vector<16x64xf32>
    %cst_107 = arith.constant dense<0.000000e+00> : vector<16x64xf32>
    %159 = tpu.matmul %11, %138, %cst_107 {dimension_numbers = #tpu.dot_dimension_numbers<[1], [0], [0], [1], [0, 0, 1, 1], [], []>} : vector<16x16xf32>, vector<16x64xf32>, vector<16x64xf32> -> vector<16x64xf32>
    %c12 = arith.constant 12 : index
    %c0_108 = arith.constant 0 : index
    %c0_109 = arith.constant 0 : index
    %160 = vector.load %arg1[%c12, %c0_108, %c0_109] : memref<19x64x64xf32, #tpu.memory_space<vmem>>, vector<1x64x64xf32>
    %161 = vector.shape_cast %160 : vector<1x64x64xf32> to vector<64x64xf32>
    %cst_110 = arith.constant dense<0.000000e+00> : vector<16x64xf32>
    %162 = tpu.matmul %159, %161, %cst_110 {dimension_numbers = #tpu.dot_dimension_numbers<[1], [0], [0], [1], [0, 0, 1, 1], [], []>} : vector<16x64xf32>, vector<64x64xf32>, vector<16x64xf32> -> vector<16x64xf32>
    %163 = arith.addf %158, %162 : vector<16x64xf32>
    %c13 = arith.constant 13 : index
    %c0_111 = arith.constant 0 : index
    %c0_112 = arith.constant 0 : index
    %164 = vector.load %arg1[%c13, %c0_111, %c0_112] : memref<19x64x64xf32, #tpu.memory_space<vmem>>, vector<1x64x64xf32>
    %165 = vector.shape_cast %164 : vector<1x64x64xf32> to vector<64x64xf32>
    %cst_113 = arith.constant dense<0.000000e+00> : vector<16x64xf32>
    %166 = tpu.matmul %159, %165, %cst_113 {dimension_numbers = #tpu.dot_dimension_numbers<[1], [0], [0], [1], [0, 0, 1, 1], [], []>} : vector<16x64xf32>, vector<64x64xf32>, vector<16x64xf32> -> vector<16x64xf32>
    %167 = arith.addf %163, %166 : vector<16x64xf32>
    %c14 = arith.constant 14 : index
    %c0_114 = arith.constant 0 : index
    %c0_115 = arith.constant 0 : index
    %168 = vector.load %arg1[%c14, %c0_114, %c0_115] : memref<19x64x64xf32, #tpu.memory_space<vmem>>, vector<1x64x64xf32>
    %169 = vector.shape_cast %168 : vector<1x64x64xf32> to vector<64x64xf32>
    %cst_116 = arith.constant dense<0.000000e+00> : vector<16x64xf32>
    %170 = tpu.matmul %159, %169, %cst_116 {dimension_numbers = #tpu.dot_dimension_numbers<[1], [0], [0], [1], [0, 0, 1, 1], [], []>} : vector<16x64xf32>, vector<64x64xf32>, vector<16x64xf32> -> vector<16x64xf32>
    %171 = arith.addf %167, %170 : vector<16x64xf32>
    %cst_117 = arith.constant dense<0.000000e+00> : vector<16x64xf32>
    %172 = tpu.matmul %16, %138, %cst_117 {dimension_numbers = #tpu.dot_dimension_numbers<[1], [0], [0], [1], [0, 0, 1, 1], [], []>} : vector<16x16xf32>, vector<16x64xf32>, vector<16x64xf32> -> vector<16x64xf32>
    %c15 = arith.constant 15 : index
    %c0_118 = arith.constant 0 : index
    %c0_119 = arith.constant 0 : index
    %173 = vector.load %arg1[%c15, %c0_118, %c0_119] : memref<19x64x64xf32, #tpu.memory_space<vmem>>, vector<1x64x64xf32>
    %174 = vector.shape_cast %173 : vector<1x64x64xf32> to vector<64x64xf32>
    %cst_120 = arith.constant dense<0.000000e+00> : vector<16x64xf32>
    %175 = tpu.matmul %172, %174, %cst_120 {dimension_numbers = #tpu.dot_dimension_numbers<[1], [0], [0], [1], [0, 0, 1, 1], [], []>} : vector<16x64xf32>, vector<64x64xf32>, vector<16x64xf32> -> vector<16x64xf32>
    %176 = arith.addf %171, %175 : vector<16x64xf32>
    %c16 = arith.constant 16 : index
    %c0_121 = arith.constant 0 : index
    %c0_122 = arith.constant 0 : index
    %177 = vector.load %arg1[%c16, %c0_121, %c0_122] : memref<19x64x64xf32, #tpu.memory_space<vmem>>, vector<1x64x64xf32>
    %178 = vector.shape_cast %177 : vector<1x64x64xf32> to vector<64x64xf32>
    %cst_123 = arith.constant dense<0.000000e+00> : vector<16x64xf32>
    %179 = tpu.matmul %172, %178, %cst_123 {dimension_numbers = #tpu.dot_dimension_numbers<[1], [0], [0], [1], [0, 0, 1, 1], [], []>} : vector<16x64xf32>, vector<64x64xf32>, vector<16x64xf32> -> vector<16x64xf32>
    %180 = arith.addf %176, %179 : vector<16x64xf32>
    %c17 = arith.constant 17 : index
    %c0_124 = arith.constant 0 : index
    %c0_125 = arith.constant 0 : index
    %181 = vector.load %arg1[%c17, %c0_124, %c0_125] : memref<19x64x64xf32, #tpu.memory_space<vmem>>, vector<1x64x64xf32>
    %182 = vector.shape_cast %181 : vector<1x64x64xf32> to vector<64x64xf32>
    %cst_126 = arith.constant dense<0.000000e+00> : vector<16x64xf32>
    %183 = tpu.matmul %172, %182, %cst_126 {dimension_numbers = #tpu.dot_dimension_numbers<[1], [0], [0], [1], [0, 0, 1, 1], [], []>} : vector<16x64xf32>, vector<64x64xf32>, vector<16x64xf32> -> vector<16x64xf32>
    %184 = arith.addf %180, %183 : vector<16x64xf32>
    %cst_127 = arith.constant 0.000000e+00 : f32
    %185 = vector.broadcast %cst_127 : f32 to vector<16x64xf32>
    %cst_128 = arith.constant dense<0.000000e+00> : vector<16x64xf32>
    %186 = tpu.matmul %6, %144, %cst_128 {dimension_numbers = #tpu.dot_dimension_numbers<[1], [0], [0], [1], [0, 0, 1, 1], [], []>} : vector<16x16xf32>, vector<16x64xf32>, vector<16x64xf32> -> vector<16x64xf32>
    %c9_129 = arith.constant 9 : index
    %c0_130 = arith.constant 0 : index
    %c0_131 = arith.constant 0 : index
    %187 = vector.load %arg1[%c9_129, %c0_130, %c0_131] : memref<19x64x64xf32, #tpu.memory_space<vmem>>, vector<1x64x64xf32>
    %188 = vector.shape_cast %187 : vector<1x64x64xf32> to vector<64x64xf32>
    %cst_132 = arith.constant dense<0.000000e+00> : vector<16x64xf32>
    %189 = tpu.matmul %186, %188, %cst_132 {dimension_numbers = #tpu.dot_dimension_numbers<[1], [0], [0], [1], [0, 0, 1, 1], [], []>} : vector<16x64xf32>, vector<64x64xf32>, vector<16x64xf32> -> vector<16x64xf32>
    %190 = arith.addf %185, %189 : vector<16x64xf32>
    %c10_133 = arith.constant 10 : index
    %c0_134 = arith.constant 0 : index
    %c0_135 = arith.constant 0 : index
    %191 = vector.load %arg1[%c10_133, %c0_134, %c0_135] : memref<19x64x64xf32, #tpu.memory_space<vmem>>, vector<1x64x64xf32>
    %192 = vector.shape_cast %191 : vector<1x64x64xf32> to vector<64x64xf32>
    %cst_136 = arith.constant dense<0.000000e+00> : vector<16x64xf32>
    %193 = tpu.matmul %186, %192, %cst_136 {dimension_numbers = #tpu.dot_dimension_numbers<[1], [0], [0], [1], [0, 0, 1, 1], [], []>} : vector<16x64xf32>, vector<64x64xf32>, vector<16x64xf32> -> vector<16x64xf32>
    %194 = arith.addf %190, %193 : vector<16x64xf32>
    %c11_137 = arith.constant 11 : index
    %c0_138 = arith.constant 0 : index
    %c0_139 = arith.constant 0 : index
    %195 = vector.load %arg1[%c11_137, %c0_138, %c0_139] : memref<19x64x64xf32, #tpu.memory_space<vmem>>, vector<1x64x64xf32>
    %196 = vector.shape_cast %195 : vector<1x64x64xf32> to vector<64x64xf32>
    %cst_140 = arith.constant dense<0.000000e+00> : vector<16x64xf32>
    %197 = tpu.matmul %186, %196, %cst_140 {dimension_numbers = #tpu.dot_dimension_numbers<[1], [0], [0], [1], [0, 0, 1, 1], [], []>} : vector<16x64xf32>, vector<64x64xf32>, vector<16x64xf32> -> vector<16x64xf32>
    %198 = arith.addf %194, %197 : vector<16x64xf32>
    %cst_141 = arith.constant dense<0.000000e+00> : vector<16x64xf32>
    %199 = tpu.matmul %11, %144, %cst_141 {dimension_numbers = #tpu.dot_dimension_numbers<[1], [0], [0], [1], [0, 0, 1, 1], [], []>} : vector<16x16xf32>, vector<16x64xf32>, vector<16x64xf32> -> vector<16x64xf32>
    %c12_142 = arith.constant 12 : index
    %c0_143 = arith.constant 0 : index
    %c0_144 = arith.constant 0 : index
    %200 = vector.load %arg1[%c12_142, %c0_143, %c0_144] : memref<19x64x64xf32, #tpu.memory_space<vmem>>, vector<1x64x64xf32>
    %201 = vector.shape_cast %200 : vector<1x64x64xf32> to vector<64x64xf32>
    %cst_145 = arith.constant dense<0.000000e+00> : vector<16x64xf32>
    %202 = tpu.matmul %199, %201, %cst_145 {dimension_numbers = #tpu.dot_dimension_numbers<[1], [0], [0], [1], [0, 0, 1, 1], [], []>} : vector<16x64xf32>, vector<64x64xf32>, vector<16x64xf32> -> vector<16x64xf32>
    %203 = arith.addf %198, %202 : vector<16x64xf32>
    %c13_146 = arith.constant 13 : index
    %c0_147 = arith.constant 0 : index
    %c0_148 = arith.constant 0 : index
    %204 = vector.load %arg1[%c13_146, %c0_147, %c0_148] : memref<19x64x64xf32, #tpu.memory_space<vmem>>, vector<1x64x64xf32>
    %205 = vector.shape_cast %204 : vector<1x64x64xf32> to vector<64x64xf32>
    %cst_149 = arith.constant dense<0.000000e+00> : vector<16x64xf32>
    %206 = tpu.matmul %199, %205, %cst_149 {dimension_numbers = #tpu.dot_dimension_numbers<[1], [0], [0], [1], [0, 0, 1, 1], [], []>} : vector<16x64xf32>, vector<64x64xf32>, vector<16x64xf32> -> vector<16x64xf32>
    %207 = arith.addf %203, %206 : vector<16x64xf32>
    %c14_150 = arith.constant 14 : index
    %c0_151 = arith.constant 0 : index
    %c0_152 = arith.constant 0 : index
    %208 = vector.load %arg1[%c14_150, %c0_151, %c0_152] : memref<19x64x64xf32, #tpu.memory_space<vmem>>, vector<1x64x64xf32>
    %209 = vector.shape_cast %208 : vector<1x64x64xf32> to vector<64x64xf32>
    %cst_153 = arith.constant dense<0.000000e+00> : vector<16x64xf32>
    %210 = tpu.matmul %199, %209, %cst_153 {dimension_numbers = #tpu.dot_dimension_numbers<[1], [0], [0], [1], [0, 0, 1, 1], [], []>} : vector<16x64xf32>, vector<64x64xf32>, vector<16x64xf32> -> vector<16x64xf32>
    %211 = arith.addf %207, %210 : vector<16x64xf32>
    %cst_154 = arith.constant dense<0.000000e+00> : vector<16x64xf32>
    %212 = tpu.matmul %16, %144, %cst_154 {dimension_numbers = #tpu.dot_dimension_numbers<[1], [0], [0], [1], [0, 0, 1, 1], [], []>} : vector<16x16xf32>, vector<16x64xf32>, vector<16x64xf32> -> vector<16x64xf32>
    %c15_155 = arith.constant 15 : index
    %c0_156 = arith.constant 0 : index
    %c0_157 = arith.constant 0 : index
    %213 = vector.load %arg1[%c15_155, %c0_156, %c0_157] : memref<19x64x64xf32, #tpu.memory_space<vmem>>, vector<1x64x64xf32>
    %214 = vector.shape_cast %213 : vector<1x64x64xf32> to vector<64x64xf32>
    %cst_158 = arith.constant dense<0.000000e+00> : vector<16x64xf32>
    %215 = tpu.matmul %212, %214, %cst_158 {dimension_numbers = #tpu.dot_dimension_numbers<[1], [0], [0], [1], [0, 0, 1, 1], [], []>} : vector<16x64xf32>, vector<64x64xf32>, vector<16x64xf32> -> vector<16x64xf32>
    %216 = arith.addf %211, %215 : vector<16x64xf32>
    %c16_159 = arith.constant 16 : index
    %c0_160 = arith.constant 0 : index
    %c0_161 = arith.constant 0 : index
    %217 = vector.load %arg1[%c16_159, %c0_160, %c0_161] : memref<19x64x64xf32, #tpu.memory_space<vmem>>, vector<1x64x64xf32>
    %218 = vector.shape_cast %217 : vector<1x64x64xf32> to vector<64x64xf32>
    %cst_162 = arith.constant dense<0.000000e+00> : vector<16x64xf32>
    %219 = tpu.matmul %212, %218, %cst_162 {dimension_numbers = #tpu.dot_dimension_numbers<[1], [0], [0], [1], [0, 0, 1, 1], [], []>} : vector<16x64xf32>, vector<64x64xf32>, vector<16x64xf32> -> vector<16x64xf32>
    %220 = arith.addf %216, %219 : vector<16x64xf32>
    %c17_163 = arith.constant 17 : index
    %c0_164 = arith.constant 0 : index
    %c0_165 = arith.constant 0 : index
    %221 = vector.load %arg1[%c17_163, %c0_164, %c0_165] : memref<19x64x64xf32, #tpu.memory_space<vmem>>, vector<1x64x64xf32>
    %222 = vector.shape_cast %221 : vector<1x64x64xf32> to vector<64x64xf32>
    %cst_166 = arith.constant dense<0.000000e+00> : vector<16x64xf32>
    %223 = tpu.matmul %212, %222, %cst_166 {dimension_numbers = #tpu.dot_dimension_numbers<[1], [0], [0], [1], [0, 0, 1, 1], [], []>} : vector<16x64xf32>, vector<64x64xf32>, vector<16x64xf32> -> vector<16x64xf32>
    %224 = arith.addf %220, %223 : vector<16x64xf32>
    %cst_167 = arith.constant 0.000000e+00 : f32
    %225 = vector.broadcast %cst_167 : f32 to vector<1x64xf32>
    %cst_168 = arith.constant 0.000000e+00 : f32
    %226 = vector.broadcast %cst_168 : f32 to vector<1x64xf32>
    %cst_169 = arith.constant dense<0.000000e+00> : vector<64xf32>
    %227 = vector.multi_reduction <add>, %184, %cst_169 [0] : vector<16x64xf32> to vector<64xf32>
    %228 = vector.shape_cast %227 : vector<64xf32> to vector<1x64xf32>
    %229 = arith.addf %225, %228 : vector<1x64xf32>
    %230 = arith.mulf %184, %184 : vector<16x64xf32>
    %cst_170 = arith.constant dense<0.000000e+00> : vector<64xf32>
    %231 = vector.multi_reduction <add>, %230, %cst_170 [0] : vector<16x64xf32> to vector<64xf32>
    %232 = vector.shape_cast %231 : vector<64xf32> to vector<1x64xf32>
    %233 = arith.addf %226, %232 : vector<1x64xf32>
    %cst_171 = arith.constant dense<0.000000e+00> : vector<64xf32>
    %234 = vector.multi_reduction <add>, %224, %cst_171 [0] : vector<16x64xf32> to vector<64xf32>
    %235 = vector.shape_cast %234 : vector<64xf32> to vector<1x64xf32>
    %236 = arith.addf %229, %235 : vector<1x64xf32>
    %237 = arith.mulf %224, %224 : vector<16x64xf32>
    %cst_172 = arith.constant dense<0.000000e+00> : vector<64xf32>
    %238 = vector.multi_reduction <add>, %237, %cst_172 [0] : vector<16x64xf32> to vector<64xf32>
    %239 = vector.shape_cast %238 : vector<64xf32> to vector<1x64xf32>
    %240 = arith.addf %233, %239 : vector<1x64xf32>
    %c18_173 = arith.constant 18 : index
    %c0_174 = arith.constant 0 : index
    %c0_175 = arith.constant 0 : index
    %241 = vector.load %arg1[%c18_173, %c0_174, %c0_175] : memref<19x64x64xf32, #tpu.memory_space<vmem>>, vector<1x64x64xf32>
    %242 = vector.shape_cast %241 : vector<1x64x64xf32> to vector<64x64xf32>
    %cst_176 = arith.constant dense<0.000000e+00> : vector<1x64xf32>
    %243 = tpu.matmul %236, %242, %cst_176 {dimension_numbers = #tpu.dot_dimension_numbers<[1], [0], [0], [1], [0, 0, 1, 1], [], []>} : vector<1x64xf32>, vector<64x64xf32>, vector<1x64xf32> -> vector<1x64xf32>
    %c18_177 = arith.constant 18 : index
    %c0_178 = arith.constant 0 : index
    %c0_179 = arith.constant 0 : index
    %244 = vector.load %arg1[%c18_177, %c0_178, %c0_179] : memref<19x64x64xf32, #tpu.memory_space<vmem>>, vector<1x64x64xf32>
    %245 = vector.shape_cast %244 : vector<1x64x64xf32> to vector<64x64xf32>
    %cst_180 = arith.constant dense<0.000000e+00> : vector<1x64xf32>
    %246 = tpu.matmul %240, %245, %cst_180 {dimension_numbers = #tpu.dot_dimension_numbers<[1], [0], [0], [1], [0, 0, 1, 1], [], []>} : vector<1x64xf32>, vector<64x64xf32>, vector<1x64xf32> -> vector<1x64xf32>
    %247 = arith.mulf %243, %243 : vector<1x64xf32>
    %248 = arith.subf %246, %247 : vector<1x64xf32>
    %c2_181 = arith.constant 2 : index
    %c0_182 = arith.constant 0 : index
    %249 = vector.load %arg2[%c2_181, %c0_182] : memref<4x64xf32, #tpu.memory_space<vmem>>, vector<1x64xf32>
    %c3_183 = arith.constant 3 : index
    %c0_184 = arith.constant 0 : index
    %250 = vector.load %arg2[%c3_183, %c0_184] : memref<4x64xf32, #tpu.memory_space<vmem>>, vector<1x64xf32>
    %cst_185 = arith.constant 9.99999974E-6 : f32
    %251 = vector.broadcast %cst_185 : f32 to vector<1x64xf32>
    %252 = arith.addf %248, %251 : vector<1x64xf32>
    %253 = math.rsqrt %252 : vector<1x64xf32>
    %254 = arith.mulf %249, %253 : vector<1x64xf32>
    %255 = arith.mulf %243, %254 : vector<1x64xf32>
    %256 = arith.subf %250, %255 : vector<1x64xf32>
    %257 = vector.broadcast %254 : vector<1x64xf32> to vector<16x64xf32>
    %258 = arith.mulf %184, %257 : vector<16x64xf32>
    %259 = vector.broadcast %256 : vector<1x64xf32> to vector<16x64xf32>
    %260 = arith.addf %258, %259 : vector<16x64xf32>
    %cst_186 = arith.constant 0.000000e+00 : f32
    %261 = vector.broadcast %cst_186 : f32 to vector<16x64xf32>
    %262 = arith.maximumf %260, %261 : vector<16x64xf32>
    %263 = vector.broadcast %254 : vector<1x64xf32> to vector<16x64xf32>
    %264 = arith.mulf %224, %263 : vector<16x64xf32>
    %265 = vector.broadcast %256 : vector<1x64xf32> to vector<16x64xf32>
    %266 = arith.addf %264, %265 : vector<16x64xf32>
    %cst_187 = arith.constant 0.000000e+00 : f32
    %267 = vector.broadcast %cst_187 : f32 to vector<16x64xf32>
    %268 = arith.maximumf %266, %267 : vector<16x64xf32>
    %c0_188 = arith.constant 0 : index
    %c0_189 = arith.constant 0 : index
    %c0_190 = arith.constant 0 : index
    %269 = vector.load %arg3[%c0_188, %c0_189, %c0_190] : memref<2x16x64xf32, #tpu.memory_space<vmem>>, vector<1x16x64xf32>
    %270 = vector.shape_cast %269 : vector<1x16x64xf32> to vector<16x64xf32>
    %271 = vector.shape_cast %262 : vector<16x64xf32> to vector<1x16x64xf32>
    tpu.vector_store %arg3[%c0_188, %c0_189, %c0_190], %271 {strides = array<i32>} : memref<2x16x64xf32, #tpu.memory_space<vmem>>, vector<1x16x64xf32>,
    %c1_191 = arith.constant 1 : index
    %c0_192 = arith.constant 0 : index
    %c0_193 = arith.constant 0 : index
    %272 = vector.load %arg3[%c1_191, %c0_192, %c0_193] : memref<2x16x64xf32, #tpu.memory_space<vmem>>, vector<1x16x64xf32>
    %273 = vector.shape_cast %272 : vector<1x16x64xf32> to vector<16x64xf32>
    %274 = vector.shape_cast %268 : vector<16x64xf32> to vector<1x16x64xf32>
    tpu.vector_store %arg3[%c1_191, %c0_192, %c0_193], %274 {strides = array<i32>} : memref<2x16x64xf32, #tpu.memory_space<vmem>>, vector<1x16x64xf32>,
    return
  }
}

</mosaic_0001>

<llo_original>
// kernel: tile.23
$region0: #{tile.23}
  #allocation0 [shape = 's32[1]{0}', space=sflag, size = 0x4, scoped, tag = 'scoped memory for tile.23']
  %s0 = inlined_call_operand.vmem [shape: f32[4], index: 0, kind: input, shape index: {}]
  %s1 = inlined_call_operand.vmem [shape: f32[16,4], index: 1, kind: output, shape index: {}]
  // Predicated region
  $region2: #{tile.23} parent=0 // pred_check
    _
  $region3: #{tile.23} parent=0 // pred_check_branch
    %3 = sbr.rel (0) target = $region5
  $region4: #{tile.23} parent=0 // pred_region
    _
  $region5: #{tile.23} parent=0 // pred_fallthru
    _
  %v4 = vld [vmem:[%s0] ss:$0 sm:$0xff]
  %5 = vst [vmem:[%s1] sm:$0xff] %v4
  %s6 = scalar_lea.vmem %s1, 8
  %7 = vst [vmem:[%s6] sm:$0xff] %v4

// kernel: tile.36
$region0: #{tile.36}
  %s0 = inlined_call_operand.vmem [shape: f32[16,4], index: 0, kind: input, shape index: {}]
  %s1 = inlined_call_operand.vmem [shape: f32[1,64], index: 1, kind: output, shape index: {}]
  $region1: #{tile.36} parent=0
    #allocation0 [shape = 'u8[4096]{0}', space=vmem, size = 0x1000, scoped, tag = 'scoped mem for output reshape']
    %v2 = vld [vmem:[%s0] sm:$0x1]
    %vm3 = vcmask 31744
    %4 = vst.msk [vmem:[#allocation0] sm:$0x1] %vm3, %v2
    %s5 = scalar_lea.vmem %s0, 15
    %v6 = vld [vmem:[%s5] sm:$0x1]
    %7 = vrot.lane.b32.xlu0 %v6, 60
    %v8 = vpop.permute.xlu0 %7
    %vm9 = vcmask 523744
    %10 = vst.msk [vmem:[#allocation0] sm:$0x1] %vm9, %v8
    %s11 = scalar_lea.vmem %s0, 14
    %v12 = vld [vmem:[%s11] sm:$0x1]
    %13 = vrot.lane.b32.xlu0 %v12, 56
    %v14 = vpop.permute.xlu0 %13
    %vm15 = vcmask 490944
    %16 = vst.msk [vmem:[#allocation0] sm:$0x1] %vm15, %v14
    %s17 = scalar_lea.vmem %s0, 13
    %v18 = vld [vmem:[%s17] sm:$0x1]
    %19 = vrot.lane.b32.xlu0 %v18, 52
    %v20 = vpop.permute.xlu0 %19
    %vm21 = vcmask 458144
    %22 = vst.msk [vmem:[#allocation0] sm:$0x1] %vm21, %v20
    %s23 = scalar_lea.vmem %s0, 12
    %v24 = vld [vmem:[%s23] sm:$0x1]
    %25 = vrot.lane.b32.xlu0 %v24, 48
    %v26 = vpop.permute.xlu0 %25
    %vm27 = vcmask 425344
    %28 = vst.msk [vmem:[#allocation0] sm:$0x1] %vm27, %v26
    %s29 = scalar_lea.vmem %s0, 11
    %v30 = vld [vmem:[%s29] sm:$0x1]
    %31 = vrot.lane.b32.xlu0 %v30, 44
    %v32 = vpop.permute.xlu0 %31
    %vm33 = vcmask 392544
    %34 = vst.msk [vmem:[#allocation0] sm:$0x1] %vm33, %v32
    %s35 = scalar_lea.vmem %s0, 10
    %v36 = vld [vmem:[%s35] sm:$0x1]
    %37 = vrot.lane.b32.xlu0 %v36, 40
    %v38 = vpop.permute.xlu0 %37
    %vm39 = vcmask 359744
    %40 = vst.msk [vmem:[#allocation0] sm:$0x1] %vm39, %v38
    %s41 = scalar_lea.vmem %s0, 9
    %v42 = vld [vmem:[%s41] sm:$0x1]
    %43 = vrot.lane.b32.xlu0 %v42, 36
    %v44 = vpop.permute.xlu0 %43
    %vm45 = vcmask 326944
    %46 = vst.msk [vmem:[#allocation0] sm:$0x1] %vm45, %v44
    %s47 = scalar_lea.vmem %s0, 8
    %v48 = vld [vmem:[%s47] sm:$0x1]
    %49 = vrot.lane.b32.xlu0 %v48, 32
    %v50 = vpop.permute.xlu0 %49
    %vm51 = vcmask 294144
    %52 = vst.msk [vmem:[#allocation0] sm:$0x1] %vm51, %v50
    %s53 = scalar_lea.vmem %s0, 7
    %v54 = vld [vmem:[%s53] sm:$0x1]
    %55 = vrot.lane.b32.xlu0 %v54, 28
    %v56 = vpop.permute.xlu0 %55
    %vm57 = vcmask 261344
    %58 = vst.msk [vmem:[#allocation0] sm:$0x1] %vm57, %v56
    %s59 = scalar_lea.vmem %s0, 6
    %v60 = vld [vmem:[%s59] sm:$0x1]
    %61 = vrot.lane.b32.xlu0 %v60, 24
    %v62 = vpop.permute.xlu0 %61
    %vm63 = vcmask 228544
    %64 = vst.msk [vmem:[#allocation0] sm:$0x1] %vm63, %v62
    %s65 = scalar_lea.vmem %s0, 5
    %v66 = vld [vmem:[%s65] sm:$0x1]
    %67 = vrot.lane.b32.xlu0 %v66, 20
    %v68 = vpop.permute.xlu0 %67
    %vm69 = vcmask 195744
    %70 = vst.msk [vmem:[#allocation0] sm:$0x1] %vm69, %v68
    %s71 = scalar_lea.vmem %s0, 4
    %v72 = vld [vmem:[%s71] sm:$0x1]
    %73 = vrot.lane.b32.xlu0 %v72, 16
    %v74 = vpop.permute.xlu0 %73
    %vm75 = vcmask 162944
    %76 = vst.msk [vmem:[#allocation0] sm:$0x1] %vm75, %v74
    %s77 = scalar_lea.vmem %s0, 3
    %v78 = vld [vmem:[%s77] sm:$0x1]
    %79 = vrot.lane.b32.xlu0 %v78, 12
    %v80 = vpop.permute.xlu0 %79
    %vm81 = vcmask 130144
    %82 = vst.msk [vmem:[#allocation0] sm:$0x1] %vm81, %v80
    %s83 = scalar_lea.vmem %s0, 2
    %v84 = vld [vmem:[%s83] sm:$0x1]
    %85 = vrot.lane.b32.xlu0 %v84, 8
    %v86 = vpop.permute.xlu0 %85
    %vm87 = vcmask 97344
    %88 = vst.msk [vmem:[#allocation0] sm:$0x1] %vm87, %v86
    %s89 = scalar_lea.vmem %s0, 1
    %v90 = vld [vmem:[%s89] sm:$0x1]
    %91 = vrot.lane.b32.xlu0 %v90, 4
    %v92 = vpop.permute.xlu0 %91
    %vm93 = vcmask 64544
    %94 = vst.msk [vmem:[#allocation0] sm:$0x1] %vm93, %v92
    %s96 = ssub.s32 2, 1
    %v97 = vld [vmem:[#allocation0] sm:%s96]
    %s99 = ssub.s32 2, 1
    %100 = vst [vmem:[%s1] sm:%s99] %v97

// kernel: tinyconv_forward.1
$region0: #{tinyconv_forward.1}
  #allocation0 [shape = 'u32[]', space=smem, size = 0x4, offset = 0x4, fixed_abs, tag = 'smem constant byte address 0x4 - core index']
  #allocation1 [shape = 'u32[72,128]{1,0:T(1,128)}', space=vmem, size = 0x9000, scoped, tag = 'internal scratch']
  %s0 = inlined_call_operand.vmem [shape: f32[2,16,64], index: 0, kind: input, shape index: {}]
  %s1 = inlined_call_operand.vmem [shape: f32[19,64,64], index: 1, kind: input, shape index: {}]
  %s2 = inlined_call_operand.vmem [shape: f32[4,64], index: 2, kind: input, shape index: {}]
  %s3 = inlined_call_operand.vmem [shape: f32[2,16,64], index: 3, kind: output, shape index: {}]
  %s4 = sld [smem:[#allocation0]]
  $region22: #{tinyconv_forward.1} parent=0
    _
  %s6 = ssub.s32 1, %s4
  %s7 = scalar_select 0, %s6, %s4
  // Predicated region
  $region2: #{tinyconv_forward.1} parent=0 // pred_check
    _
  $region3: #{tinyconv_forward.1} parent=0 // pred_check_branch
    %9 = sbr.rel (0) target = $region5
  $region4: #{tinyconv_forward.1} parent=0 // pred_region
    _
  $region5: #{tinyconv_forward.1} parent=0 // pred_fallthru
    _
  // Predicated region
  $region6: #{tinyconv_forward.1} parent=0 // pred_check
    _
  $region7: #{tinyconv_forward.1} parent=0 // pred_check_branch
    %11 = sbr.rel (0) target = $region9
  $region8: #{tinyconv_forward.1} parent=0 // pred_region
    _
  $region9: #{tinyconv_forward.1} parent=0 // pred_fallthru
    _
  // Predicated region
  $region10: #{tinyconv_forward.1} parent=0 // pred_check
    _
  $region11: #{tinyconv_forward.1} parent=0 // pred_check_branch
    %13 = sbr.rel (0) target = $region13
  $region12: #{tinyconv_forward.1} parent=0 // pred_region
    _
  $region13: #{tinyconv_forward.1} parent=0 // pred_fallthru
    _
  %v14 = vlaneseq
  %v15 = vshrl.u32 %v14, 7
  %v16 = vadd.s32 %v15, 8
  %v17 = vlaneseq
  %v18 = vand.u32 %v17, 127
  %v19 = vadd.s32 %v15, 4294967295
  %v20 = vadd.s32 %v16, 4294967295
  %vm21 = vcmp.eq.s32.totalorder %v18, %v19
  %vm22 = vcmp.eq.s32.totalorder %v18, %v20
  %v23 = vsel %vm21, 1, 0
  %v24 = vsel %vm22, 1, 0
  %v25 = vcvt.s32.f32 %v23
  %v26 = vcvt.s32.f32 %v24
  %vm27 = vcmp.eq.s32.totalorder %v18, %v15
  %vm28 = vcmp.eq.s32.totalorder %v18, %v16
  %v29 = vsel %vm27, 1, 0
  %v30 = vsel %vm28, 1, 0
  %v31 = vcvt.s32.f32 %v29
  %v32 = vcvt.s32.f32 %v30
  %v33 = vadd.s32 %v15, 1
  %v34 = vadd.s32 %v16, 1
  %vm35 = vcmp.eq.s32.totalorder %v18, %v33
  %vm36 = vcmp.eq.s32.totalorder %v18, %v34
  %v37 = vsel %vm35, 1, 0
  %v38 = vsel %vm36, 1, 0
  %v39 = vcvt.s32.f32 %v37
  %v40 = vcvt.s32.f32 %v38
  %v41 = vld [vmem:[%s0] sm:$0xff]
  %v42 = vld [vmem:[%s0 + $0x8] sm:$0xff]
  %s43 = scalar_lea.vmem %s0, 16
  %v44 = vld [vmem:[%s43] sm:$0xff]
  %v45 = vld [vmem:[%s43 + $0x8] sm:$0xff]
  %vm46 = vcmask 130048
  %v48 = vsel %vm46, %v25, 0
  %v51 = vsel %vm46, %v26, 0
  %53 = vmatpush.msra.mxu0 0.0
  %54 = vmatpush.msra.mxu0 0.0
  %55 = vmatpush.msra.mxu0 0.0
  %56 = vmatpush.msra.mxu0 0.0
  %57 = vmatpush.msra.mxu0 0.0
  %58 = vmatpush.msra.mxu0 0.0
  %59 = vmatpush.msra.mxu0 0.0
  %60 = vmatpush.msra.mxu0 0.0
  %61 = vmatpush.msra.mxu0 0.0
  %62 = vmatpush.msra.mxu0 0.0
  %63 = vmatpush.msra.mxu0 0.0
  %64 = vmatpush.msra.mxu0 0.0
  %65 = vmatpush.msra.mxu0 0.0
  %66 = vmatpush.msra.mxu0 0.0
  %67 = vmatpush.msra.mxu0 %v42
  %68 = vmatpush.msra.mxu0 %v41
  %69 = vmatmul.f32.gmra.mxu0 %v48
  %v70 = vpop.f32.mrf.mxu0
  %v71 = vadd.f32 0.0, %v70
  %72 = vmatmul.f32.gmra.mxu0 %v51
  %v73 = vpop.f32.mrf.mxu0
  %v74 = vadd.f32 0.0, %v73
  %75 = vdwg.mxu0
  %v76 = vld [vmem:[%s1] sm:$0xff]
  %v77 = vld [vmem:[%s1 + $0x8] sm:$0xff]
  %v78 = vld [vmem:[%s1 + $0x10] sm:$0xff]
  %v79 = vld [vmem:[%s1 + $0x18] sm:$0xff]
  %v80 = vld [vmem:[%s1 + $0x20] sm:$0xff]
  %v81 = vld [vmem:[%s1 + $0x28] sm:$0xff]
  %v82 = vld [vmem:[%s1 + $0x30] sm:$0xff]
  %v83 = vld [vmem:[%s1 + $0x38] sm:$0xff]
  %s84 = scalar_lea.vmem %s1, 64
  %v85 = vld [vmem:[%s84] sm:$0xff]
  %v86 = vld [vmem:[%s84 + $0x8] sm:$0xff]
  %v87 = vld [vmem:[%s84 + $0x10] sm:$0xff]
  %v88 = vld [vmem:[%s84 + $0x18] sm:$0xff]
  %v89 = vld [vmem:[%s84 + $0x20] sm:$0xff]
  %v90 = vld [vmem:[%s84 + $0x28] sm:$0xff]
  %v91 = vld [vmem:[%s84 + $0x30] sm:$0xff]
  %v92 = vld [vmem:[%s84 + $0x38] sm:$0xff]
  %vm93 = vcmask 523264
  %v95 = vsel %vm93, %v71, 0
  %v98 = vsel %vm93, %v74, 0
  %100 = vmatpush.msra.mxu0 0.0
  %101 = vmatpush.msra.mxu0 0.0
  %102 = vmatpush.msra.mxu0 0.0
  %103 = vmatpush.msra.mxu0 0.0
  %104 = vmatpush.msra.mxu0 0.0
  %105 = vmatpush.msra.mxu0 0.0
  %106 = vmatpush.msra.mxu0 0.0
  %107 = vmatpush.msra.mxu0 0.0
  %108 = vmatpush.msra.mxu0 %v92
  %109 = vmatpush.msra.mxu0 %v91
  %110 = vmatpush.msra.mxu0 %v90
  %111 = vmatpush.msra.mxu0 %v89
  %112 = vmatpush.msra.mxu0 %v88
  %113 = vmatpush.msra.mxu0 %v87
  %114 = vmatpush.msra.mxu0 %v86
  %115 = vmatpush.msra.mxu0 %v85
  %116 = vmatmul.f32.gmra.mxu0 %v95
  %v117 = vpop.f32.mrf.mxu0
  %v118 = vadd.f32 0.0, %v117
  %119 = vmatmul.f32.gmra.mxu0 %v98
  %v120 = vpop.f32.mrf.mxu0
  %v121 = vadd.f32 0.0, %v120
  %122 = vdwg.mxu0
  %123 = vmatpush.msra.mxu0 0.0
  %124 = vmatpush.msra.mxu0 0.0
  %125 = vmatpush.msra.mxu0 0.0
  %126 = vmatpush.msra.mxu0 0.0
  %127 = vmatpush.msra.mxu0 0.0
  %128 = vmatpush.msra.mxu0 0.0
  %129 = vmatpush.msra.mxu0 0.0
  %130 = vmatpush.msra.mxu0 0.0
  %131 = vmatpush.msra.mxu0 %v83
  %132 = vmatpush.msra.mxu0 %v82
  %133 = vmatpush.msra.mxu0 %v81
  %134 = vmatpush.msra.mxu0 %v80
  %135 = vmatpush.msra.mxu0 %v79
  %136 = vmatpush.msra.mxu0 %v78
  %137 = vmatpush.msra.mxu0 %v77
  %138 = vmatpush.msra.mxu0 %v76
  %139 = vmatmul.f32.gmra.mxu0 %v95
  %v140 = vpop.f32.mrf.mxu0
  %v141 = vadd.f32 %v118, %v140
  %142 = vmatmul.f32.gmra.mxu0 %v98
  %v143 = vpop.f32.mrf.mxu0
  %v144 = vadd.f32 %v121, %v143
  %145 = vdwg.mxu0
  %s146 = scalar_lea.vmem %s1, 128
  %v147 = vld [vmem:[%s146] sm:$0xff]
  %v148 = vld [vmem:[%s146 + $0x8] sm:$0xff]
  %v149 = vld [vmem:[%s146 + $0x10] sm:$0xff]
  %v150 = vld [vmem:[%s146 + $0x18] sm:$0xff]
  %v151 = vld [vmem:[%s146 + $0x20] sm:$0xff]
  %v152 = vld [vmem:[%s146 + $0x28] sm:$0xff]
  %v153 = vld [vmem:[%s146 + $0x30] sm:$0xff]
  %v154 = vld [vmem:[%s146 + $0x38] sm:$0xff]
  %155 = vmatpush.msra.mxu0 0.0
  %156 = vmatpush.msra.mxu0 0.0
  %157 = vmatpush.msra.mxu0 0.0
  %158 = vmatpush.msra.mxu0 0.0
  %159 = vmatpush.msra.mxu0 0.0
  %160 = vmatpush.msra.mxu0 0.0
  %161 = vmatpush.msra.mxu0 0.0
  %162 = vmatpush.msra.mxu0 0.0
  %163 = vmatpush.msra.mxu0 %v154
  %164 = vmatpush.msra.mxu0 %v153
  %165 = vmatpush.msra.mxu0 %v152
  %166 = vmatpush.msra.mxu0 %v151
  %167 = vmatpush.msra.mxu0 %v150
  %168 = vmatpush.msra.mxu0 %v149
  %169 = vmatpush.msra.mxu0 %v148
  %170 = vmatpush.msra.mxu0 %v147
  %171 = vmatmul.f32.gmra.mxu0 %v95
  %v172 = vpop.f32.mrf.mxu0
  %v173 = vadd.f32 0.0, %v172
  %174 = vmatmul.f32.gmra.mxu0 %v98
  %v175 = vpop.f32.mrf.mxu0
  %v176 = vadd.f32 0.0, %v175
  %177 = vdwg.mxu0
  %v178 = vadd.f32 %v141, %v173
  %v179 = vadd.f32 %v144, %v176
  %v181 = vsel %vm46, %v31, 0
  %v184 = vsel %vm46, %v32, 0
  %186 = vmatpush.msra.mxu0 0.0
  %187 = vmatpush.msra.mxu0 0.0
  %188 = vmatpush.msra.mxu0 0.0
  %189 = vmatpush.msra.mxu0 0.0
  %190 = vmatpush.msra.mxu0 0.0
  %191 = vmatpush.msra.mxu0 0.0
  %192 = vmatpush.msra.mxu0 0.0
  %193 = vmatpush.msra.mxu0 0.0
  %194 = vmatpush.msra.mxu0 0.0
  %195 = vmatpush.msra.mxu0 0.0
  %196 = vmatpush.msra.mxu0 0.0
  %197 = vmatpush.msra.mxu0 0.0
  %198 = vmatpush.msra.mxu0 0.0
  %199 = vmatpush.msra.mxu0 0.0
  %200 = vmatpush.msra.mxu0 %v42
  %201 = vmatpush.msra.mxu0 %v41
  %202 = vmatmul.f32.gmra.mxu0 %v181
  %v203 = vpop.f32.mrf.mxu0
  %v204 = vadd.f32 0.0, %v203
  %205 = vmatmul.f32.gmra.mxu0 %v184
  %v206 = vpop.f32.mrf.mxu0
  %v207 = vadd.f32 0.0, %v206
  %208 = vdwg.mxu0
  %s209 = scalar_lea.vmem %s1, 192
  %v210 = vld [vmem:[%s209] sm:$0xff]
  %v211 = vld [vmem:[%s209 + $0x8] sm:$0xff]
  %v212 = vld [vmem:[%s209 + $0x10] sm:$0xff]
  %v213 = vld [vmem:[%s209 + $0x18] sm:$0xff]
  %v214 = vld [vmem:[%s209 + $0x20] sm:$0xff]
  %v215 = vld [vmem:[%s209 + $0x28] sm:$0xff]
  %v216 = vld [vmem:[%s209 + $0x30] sm:$0xff]
  %v217 = vld [vmem:[%s209 + $0x38] sm:$0xff]
  %v219 = vsel %vm93, %v204, 0
  %v222 = vsel %vm93, %v207, 0
  %224 = vmatpush.msra.mxu0 0.0
  %225 = vmatpush.msra.mxu0 0.0
  %226 = vmatpush.msra.mxu0 0.0
  %227 = vmatpush.msra.mxu0 0.0
  %228 = vmatpush.msra.mxu0 0.0
  %229 = vmatpush.msra.mxu0 0.0
  %230 = vmatpush.msra.mxu0 0.0
  %231 = vmatpush.msra.mxu0 0.0
  %232 = vmatpush.msra.mxu0 %v217
  %233 = vmatpush.msra.mxu0 %v216
  %234 = vmatpush.msra.mxu0 %v215
  %235 = vmatpush.msra.mxu0 %v214
  %236 = vmatpush.msra.mxu0 %v213
  %237 = vmatpush.msra.mxu0 %v212
  %238 = vmatpush.msra.mxu0 %v211
  %239 = vmatpush.msra.mxu0 %v210
  %240 = vmatmul.f32.gmra.mxu0 %v219
  %v241 = vpop.f32.mrf.mxu0
  %v242 = vadd.f32 0.0, %v241
  %243 = vmatmul.f32.gmra.mxu0 %v222
  %v244 = vpop.f32.mrf.mxu0
  %v245 = vadd.f32 0.0, %v244
  %246 = vdwg.mxu0
  %v247 = vadd.f32 %v178, %v242
  %v248 = vadd.f32 %v179, %v245
  %s249 = scalar_lea.vmem %s1, 256
  %v250 = vld [vmem:[%s249] sm:$0xff]
  %v251 = vld [vmem:[%s249 + $0x8] sm:$0xff]
  %v252 = vld [vmem:[%s249 + $0x10] sm:$0xff]
  %v253 = vld [vmem:[%s249 + $0x18] sm:$0xff]
  %v254 = vld [vmem:[%s249 + $0x20] sm:$0xff]
  %v255 = vld [vmem:[%s249 + $0x28] sm:$0xff]
  %v256 = vld [vmem:[%s249 + $0x30] sm:$0xff]
  %v257 = vld [vmem:[%s249 + $0x38] sm:$0xff]
  %258 = vmatpush.msra.mxu0 0.0
  %259 = vmatpush.msra.mxu0 0.0
  %260 = vmatpush.msra.mxu0 0.0
  %261 = vmatpush.msra.mxu0 0.0
  %262 = vmatpush.msra.mxu0 0.0
  %263 = vmatpush.msra.mxu0 0.0
  %264 = vmatpush.msra.mxu0 0.0
  %265 = vmatpush.msra.mxu0 0.0
  %266 = vmatpush.msra.mxu0 %v257
  %267 = vmatpush.msra.mxu0 %v256
  %268 = vmatpush.msra.mxu0 %v255
  %269 = vmatpush.msra.mxu0 %v254
  %270 = vmatpush.msra.mxu0 %v253
  %271 = vmatpush.msra.mxu0 %v252
  %272 = vmatpush.msra.mxu0 %v251
  %273 = vmatpush.msra.mxu0 %v250
  %274 = vmatmul.f32.gmra.mxu0 %v219
  %v275 = vpop.f32.mrf.mxu0
  %v276 = vadd.f32 0.0, %v275
  %277 = vmatmul.f32.gmra.mxu0 %v222
  %v278 = vpop.f32.mrf.mxu0
  %v279 = vadd.f32 0.0, %v278
  %280 = vdwg.mxu0
  %v281 = vadd.f32 %v247, %v276
  %v282 = vadd.f32 %v248, %v279
  %s283 = scalar_lea.vmem %s1, 320
  %v284 = vld [vmem:[%s283] sm:$0xff]
  %v285 = vld [vmem:[%s283 + $0x8] sm:$0xff]
  %v286 = vld [vmem:[%s283 + $0x10] sm:$0xff]
  %v287 = vld [vmem:[%s283 + $0x18] sm:$0xff]
  %v288 = vld [vmem:[%s283 + $0x20] sm:$0xff]
  %v289 = vld [vmem:[%s283 + $0x28] sm:$0xff]
  %v290 = vld [vmem:[%s283 + $0x30] sm:$0xff]
  %v291 = vld [vmem:[%s283 + $0x38] sm:$0xff]
  %292 = vmatpush.msra.mxu0 0.0
  %293 = vmatpush.msra.mxu0 0.0
  %294 = vmatpush.msra.mxu0 0.0
  %295 = vmatpush.msra.mxu0 0.0
  %296 = vmatpush.msra.mxu0 0.0
  %297 = vmatpush.msra.mxu0 0.0
  %298 = vmatpush.msra.mxu0 0.0
  %299 = vmatpush.msra.mxu0 0.0
  %300 = vmatpush.msra.mxu0 %v291
  %301 = vmatpush.msra.mxu0 %v290
  %302 = vmatpush.msra.mxu0 %v289
  %303 = vmatpush.msra.mxu0 %v288
  %304 = vmatpush.msra.mxu0 %v287
  %305 = vmatpush.msra.mxu0 %v286
  %306 = vmatpush.msra.mxu0 %v285
  %307 = vmatpush.msra.mxu0 %v284
  %308 = vmatmul.f32.gmra.mxu0 %v219
  %v309 = vpop.f32.mrf.mxu0
  %v310 = vadd.f32 0.0, %v309
  %311 = vmatmul.f32.gmra.mxu0 %v222
  %v312 = vpop.f32.mrf.mxu0
  %v313 = vadd.f32 0.0, %v312
  %314 = vdwg.mxu0
  %v315 = vadd.f32 %v281, %v310
  %v316 = vadd.f32 %v282, %v313
  %v318 = vsel %vm46, %v39, 0
  %v321 = vsel %vm46, %v40, 0
  %323 = vmatpush.msra.mxu0 0.0
  %324 = vmatpush.msra.mxu0 0.0
  %325 = vmatpush.msra.mxu0 0.0
  %326 = vmatpush.msra.mxu0 0.0
  %327 = vmatpush.msra.mxu0 0.0
  %328 = vmatpush.msra.mxu0 0.0
  %329 = vmatpush.msra.mxu0 0.0
  %330 = vmatpush.msra.mxu0 0.0
  %331 = vmatpush.msra.mxu0 0.0
  %332 = vmatpush.msra.mxu0 0.0
  %333 = vmatpush.msra.mxu0 0.0
  %334 = vmatpush.msra.mxu0 0.0
  %335 = vmatpush.msra.mxu0 0.0
  %336 = vmatpush.msra.mxu0 0.0
  %337 = vmatpush.msra.mxu0 %v42
  %338 = vmatpush.msra.mxu0 %v41
  %339 = vmatmul.f32.gmra.mxu0 %v318
  %v340 = vpop.f32.mrf.mxu0
  %v341 = vadd.f32 0.0, %v340
  %342 = vmatmul.f32.gmra.mxu0 %v321
  %v343 = vpop.f32.mrf.mxu0
  %v344 = vadd.f32 0.0, %v343
  %345 = vdwg.mxu0
  %s346 = scalar_lea.vmem %s1, 384
  %v347 = vld [vmem:[%s346] sm:$0xff]
  %v348 = vld [vmem:[%s346 + $0x8] sm:$0xff]
  %v349 = vld [vmem:[%s346 + $0x10] sm:$0xff]
  %v350 = vld [vmem:[%s346 + $0x18] sm:$0xff]
  %v351 = vld [vmem:[%s346 + $0x20] sm:$0xff]
  %v352 = vld [vmem:[%s346 + $0x28] sm:$0xff]
  %v353 = vld [vmem:[%s346 + $0x30] sm:$0xff]
  %v354 = vld [vmem:[%s346 + $0x38] sm:$0xff]
  %v356 = vsel %vm93, %v341, 0
  %v359 = vsel %vm93, %v344, 0
  %361 = vmatpush.msra.mxu0 0.0
  %362 = vmatpush.msra.mxu0 0.0
  %363 = vmatpush.msra.mxu0 0.0
  %364 = vmatpush.msra.mxu0 0.0
  %365 = vmatpush.msra.mxu0 0.0
  %366 = vmatpush.msra.mxu0 0.0
  %367 = vmatpush.msra.mxu0 0.0
  %368 = vmatpush.msra.mxu0 0.0
  %369 = vmatpush.msra.mxu0 %v354
  %370 = vmatpush.msra.mxu0 %v353
  %371 = vmatpush.msra.mxu0 %v352
  %372 = vmatpush.msra.mxu0 %v351
  %373 = vmatpush.msra.mxu0 %v350
  %374 = vmatpush.msra.mxu0 %v349
  %375 = vmatpush.msra.mxu0 %v348
  %376 = vmatpush.msra.mxu0 %v347
  %377 = vmatmul.f32.gmra.mxu0 %v356
  %v378 = vpop.f32.mrf.mxu0
  %v379 = vadd.f32 0.0, %v378
  %380 = vmatmul.f32.gmra.mxu0 %v359
  %v381 = vpop.f32.mrf.mxu0
  %v382 = vadd.f32 0.0, %v381
  %383 = vdwg.mxu0
  %v384 = vadd.f32 %v315, %v379
  %v385 = vadd.f32 %v316, %v382
  %s386 = scalar_lea.vmem %s1, 448
  %v387 = vld [vmem:[%s386] sm:$0xff]
  %v388 = vld [vmem:[%s386 + $0x8] sm:$0xff]
  %v389 = vld [vmem:[%s386 + $0x10] sm:$0xff]
  %v390 = vld [vmem:[%s386 + $0x18] sm:$0xff]
  %v391 = vld [vmem:[%s386 + $0x20] sm:$0xff]
  %v392 = vld [vmem:[%s386 + $0x28] sm:$0xff]
  %v393 = vld [vmem:[%s386 + $0x30] sm:$0xff]
  %v394 = vld [vmem:[%s386 + $0x38] sm:$0xff]
  %395 = vmatpush.msra.mxu0 0.0
  %396 = vmatpush.msra.mxu0 0.0
  %397 = vmatpush.msra.mxu0 0.0
  %398 = vmatpush.msra.mxu0 0.0
  %399 = vmatpush.msra.mxu0 0.0
  %400 = vmatpush.msra.mxu0 0.0
  %401 = vmatpush.msra.mxu0 0.0
  %402 = vmatpush.msra.mxu0 0.0
  %403 = vmatpush.msra.mxu0 %v394
  %404 = vmatpush.msra.mxu0 %v393
  %405 = vmatpush.msra.mxu0 %v392
  %406 = vmatpush.msra.mxu0 %v391
  %407 = vmatpush.msra.mxu0 %v390
  %408 = vmatpush.msra.mxu0 %v389
  %409 = vmatpush.msra.mxu0 %v388
  %410 = vmatpush.msra.mxu0 %v387
  %411 = vmatmul.f32.gmra.mxu0 %v356
  %v412 = vpop.f32.mrf.mxu0
  %v413 = vadd.f32 0.0, %v412
  %414 = vmatmul.f32.gmra.mxu0 %v359
  %v415 = vpop.f32.mrf.mxu0
  %v416 = vadd.f32 0.0, %v415
  %417 = vdwg.mxu0
  %v418 = vadd.f32 %v384, %v413
  %v419 = vadd.f32 %v385, %v416
  %s420 = scalar_lea.vmem %s1, 512
  %v421 = vld [vmem:[%s420] sm:$0xff]
  %v422 = vld [vmem:[%s420 + $0x8] sm:$0xff]
  %v423 = vld [vmem:[%s420 + $0x10] sm:$0xff]
  %v424 = vld [vmem:[%s420 + $0x18] sm:$0xff]
  %v425 = vld [vmem:[%s420 + $0x20] sm:$0xff]
  %v426 = vld [vmem:[%s420 + $0x28] sm:$0xff]
  %v427 = vld [vmem:[%s420 + $0x30] sm:$0xff]
  %v428 = vld [vmem:[%s420 + $0x38] sm:$0xff]
  %429 = vmatpush.msra.mxu0 0.0
  %430 = vmatpush.msra.mxu0 0.0
  %431 = vmatpush.msra.mxu0 0.0
  %432 = vmatpush.msra.mxu0 0.0
  %433 = vmatpush.msra.mxu0 0.0
  %434 = vmatpush.msra.mxu0 0.0
  %435 = vmatpush.msra.mxu0 0.0
  %436 = vmatpush.msra.mxu0 0.0
  %437 = vmatpush.msra.mxu0 %v428
  %438 = vmatpush.msra.mxu0 %v427
  %439 = vmatpush.msra.mxu0 %v426
  %440 = vmatpush.msra.mxu0 %v425
  %441 = vmatpush.msra.mxu0 %v424
  %442 = vmatpush.msra.mxu0 %v423
  %443 = vmatpush.msra.mxu0 %v422
  %444 = vmatpush.msra.mxu0 %v421
  %445 = vmatmul.f32.gmra.mxu0 %v356
  %v446 = vpop.f32.mrf.mxu0
  %v447 = vadd.f32 0.0, %v446
  %448 = vmatmul.f32.gmra.mxu0 %v359
  %v449 = vpop.f32.mrf.mxu0
  %v450 = vadd.f32 0.0, %v449
  %451 = vdwg.mxu0
  %v452 = vadd.f32 %v418, %v447
  %v453 = vadd.f32 %v419, %v450
  %454 = vmatpush.msra.mxu0 0.0
  %455 = vmatpush.msra.mxu0 0.0
  %456 = vmatpush.msra.mxu0 0.0
  %457 = vmatpush.msra.mxu0 0.0
  %458 = vmatpush.msra.mxu0 0.0
  %459 = vmatpush.msra.mxu0 0.0
  %460 = vmatpush.msra.mxu0 0.0
  %461 = vmatpush.msra.mxu0 0.0
  %462 = vmatpush.msra.mxu0 0.0
  %463 = vmatpush.msra.mxu0 0.0
  %464 = vmatpush.msra.mxu0 0.0
  %465 = vmatpush.msra.mxu0 0.0
  %466 = vmatpush.msra.mxu0 0.0
  %467 = vmatpush.msra.mxu0 0.0
  %468 = vmatpush.msra.mxu0 %v45
  %469 = vmatpush.msra.mxu0 %v44
  %470 = vmatmul.f32.gmra.mxu0 %v48
  %v471 = vpop.f32.mrf.mxu0
  %v472 = vadd.f32 0.0, %v471
  %473 = vmatmul.f32.gmra.mxu0 %v51
  %v474 = vpop.f32.mrf.mxu0
  %v475 = vadd.f32 0.0, %v474
  %476 = vdwg.mxu0
  %v478 = vsel %vm93, %v472, 0
  %v481 = vsel %vm93, %v475, 0
  %483 = vmatpush.msra.mxu0 0.0
  %484 = vmatpush.msra.mxu0 0.0
  %485 = vmatpush.msra.mxu0 0.0
  %486 = vmatpush.msra.mxu0 0.0
  %487 = vmatpush.msra.mxu0 0.0
  %488 = vmatpush.msra.mxu0 0.0
  %489 = vmatpush.msra.mxu0 0.0
  %490 = vmatpush.msra.mxu0 0.0
  %491 = vmatpush.msra.mxu0 %v92
  %492 = vmatpush.msra.mxu0 %v91
  %493 = vmatpush.msra.mxu0 %v90
  %494 = vmatpush.msra.mxu0 %v89
  %495 = vmatpush.msra.mxu0 %v88
  %496 = vmatpush.msra.mxu0 %v87
  %497 = vmatpush.msra.mxu0 %v86
  %498 = vmatpush.msra.mxu0 %v85
  %499 = vmatmul.f32.gmra.mxu0 %v478
  %v500 = vpop.f32.mrf.mxu0
  %v501 = vadd.f32 0.0, %v500
  %502 = vmatmul.f32.gmra.mxu0 %v481
  %v503 = vpop.f32.mrf.mxu0
  %v504 = vadd.f32 0.0, %v503
  %505 = vdwg.mxu0
  %506 = vmatpush.msra.mxu0 0.0
  %507 = vmatpush.msra.mxu0 0.0
  %508 = vmatpush.msra.mxu0 0.0
  %509 = vmatpush.msra.mxu0 0.0
  %510 = vmatpush.msra.mxu0 0.0
  %511 = vmatpush.msra.mxu0 0.0
  %512 = vmatpush.msra.mxu0 0.0
  %513 = vmatpush.msra.mxu0 0.0
  %514 = vmatpush.msra.mxu0 %v83
  %515 = vmatpush.msra.mxu0 %v82
  %516 = vmatpush.msra.mxu0 %v81
  %517 = vmatpush.msra.mxu0 %v80
  %518 = vmatpush.msra.mxu0 %v79
  %519 = vmatpush.msra.mxu0 %v78
  %520 = vmatpush.msra.mxu0 %v77
  %521 = vmatpush.msra.mxu0 %v76
  %522 = vmatmul.f32.gmra.mxu0 %v478
  %v523 = vpop.f32.mrf.mxu0
  %v524 = vadd.f32 %v501, %v523
  %525 = vmatmul.f32.gmra.mxu0 %v481
  %v526 = vpop.f32.mrf.mxu0
  %v527 = vadd.f32 %v504, %v526
  %528 = vdwg.mxu0
  %529 = vmatpush.msra.mxu0 0.0
  %530 = vmatpush.msra.mxu0 0.0
  %531 = vmatpush.msra.mxu0 0.0
  %532 = vmatpush.msra.mxu0 0.0
  %533 = vmatpush.msra.mxu0 0.0
  %534 = vmatpush.msra.mxu0 0.0
  %535 = vmatpush.msra.mxu0 0.0
  %536 = vmatpush.msra.mxu0 0.0
  %537 = vmatpush.msra.mxu0 %v154
  %538 = vmatpush.msra.mxu0 %v153
  %539 = vmatpush.msra.mxu0 %v152
  %540 = vmatpush.msra.mxu0 %v151
  %541 = vmatpush.msra.mxu0 %v150
  %542 = vmatpush.msra.mxu0 %v149
  %543 = vmatpush.msra.mxu0 %v148
  %544 = vmatpush.msra.mxu0 %v147
  %545 = vmatmul.f32.gmra.mxu0 %v478
  %v546 = vpop.f32.mrf.mxu0
  %v547 = vadd.f32 0.0, %v546
  %548 = vmatmul.f32.gmra.mxu0 %v481
  %v549 = vpop.f32.mrf.mxu0
  %v550 = vadd.f32 0.0, %v549
  %551 = vdwg.mxu0
  %v552 = vadd.f32 %v524, %v547
  %v553 = vadd.f32 %v527, %v550
  %554 = vmatpush.msra.mxu0 0.0
  %555 = vmatpush.msra.mxu0 0.0
  %556 = vmatpush.msra.mxu0 0.0
  %557 = vmatpush.msra.mxu0 0.0
  %558 = vmatpush.msra.mxu0 0.0
  %559 = vmatpush.msra.mxu0 0.0
  %560 = vmatpush.msra.mxu0 0.0
  %561 = vmatpush.msra.mxu0 0.0
  %562 = vmatpush.msra.mxu0 0.0
  %563 = vmatpush.msra.mxu0 0.0
  %564 = vmatpush.msra.mxu0 0.0
  %565 = vmatpush.msra.mxu0 0.0
  %566 = vmatpush.msra.mxu0 0.0
  %567 = vmatpush.msra.mxu0 0.0
  %568 = vmatpush.msra.mxu0 %v45
  %569 = vmatpush.msra.mxu0 %v44
  %570 = vmatmul.f32.gmra.mxu0 %v181
  %v571 = vpop.f32.mrf.mxu0
  %v572 = vadd.f32 0.0, %v571
  %573 = vmatmul.f32.gmra.mxu0 %v184
  %v574 = vpop.f32.mrf.mxu0
  %v575 = vadd.f32 0.0, %v574
  %576 = vdwg.mxu0
  %v578 = vsel %vm93, %v572, 0
  %v581 = vsel %vm93, %v575, 0
  %583 = vmatpush.msra.mxu0 0.0
  %584 = vmatpush.msra.mxu0 0.0
  %585 = vmatpush.msra.mxu0 0.0
  %586 = vmatpush.msra.mxu0 0.0
  %587 = vmatpush.msra.mxu0 0.0
  %588 = vmatpush.msra.mxu0 0.0
  %589 = vmatpush.msra.mxu0 0.0
  %590 = vmatpush.msra.mxu0 0.0
  %591 = vmatpush.msra.mxu0 %v217
  %592 = vmatpush.msra.mxu0 %v216
  %593 = vmatpush.msra.mxu0 %v215
  %594 = vmatpush.msra.mxu0 %v214
  %595 = vmatpush.msra.mxu0 %v213
  %596 = vmatpush.msra.mxu0 %v212
  %597 = vmatpush.msra.mxu0 %v211
  %598 = vmatpush.msra.mxu0 %v210
  %599 = vmatmul.f32.gmra.mxu0 %v578
  %v600 = vpop.f32.mrf.mxu0
  %v601 = vadd.f32 0.0, %v600
  %602 = vmatmul.f32.gmra.mxu0 %v581
  %v603 = vpop.f32.mrf.mxu0
  %v604 = vadd.f32 0.0, %v603
  %605 = vdwg.mxu0
  %v606 = vadd.f32 %v552, %v601
  %v607 = vadd.f32 %v553, %v604
  %608 = vmatpush.msra.mxu0 0.0
  %609 = vmatpush.msra.mxu0 0.0
  %610 = vmatpush.msra.mxu0 0.0
  %611 = vmatpush.msra.mxu0 0.0
  %612 = vmatpush.msra.mxu0 0.0
  %613 = vmatpush.msra.mxu0 0.0
  %614 = vmatpush.msra.mxu0 0.0
  %615 = vmatpush.msra.mxu0 0.0
  %616 = vmatpush.msra.mxu0 %v257
  %617 = vmatpush.msra.mxu0 %v256
  %618 = vmatpush.msra.mxu0 %v255
  %619 = vmatpush.msra.mxu0 %v254
  %620 = vmatpush.msra.mxu0 %v253
  %621 = vmatpush.msra.mxu0 %v252
  %622 = vmatpush.msra.mxu0 %v251
  %623 = vmatpush.msra.mxu0 %v250
  %624 = vmatmul.f32.gmra.mxu0 %v578
  %v625 = vpop.f32.mrf.mxu0
  %v626 = vadd.f32 0.0, %v625
  %627 = vmatmul.f32.gmra.mxu0 %v581
  %v628 = vpop.f32.mrf.mxu0
  %v629 = vadd.f32 0.0, %v628
  %630 = vdwg.mxu0
  %v631 = vadd.f32 %v606, %v626
  %v632 = vadd.f32 %v607, %v629
  %633 = vmatpush.msra.mxu0 0.0
  %634 = vmatpush.msra.mxu0 0.0
  %635 = vmatpush.msra.mxu0 0.0
  %636 = vmatpush.msra.mxu0 0.0
  %637 = vmatpush.msra.mxu0 0.0
  %638 = vmatpush.msra.mxu0 0.0
  %639 = vmatpush.msra.mxu0 0.0
  %640 = vmatpush.msra.mxu0 0.0
  %641 = vmatpush.msra.mxu0 %v291
  %642 = vmatpush.msra.mxu0 %v290
  %643 = vmatpush.msra.mxu0 %v289
  %644 = vmatpush.msra.mxu0 %v288
  %645 = vmatpush.msra.mxu0 %v287
  %646 = vmatpush.msra.mxu0 %v286
  %647 = vmatpush.msra.mxu0 %v285
  %648 = vmatpush.msra.mxu0 %v284
  %649 = vmatmul.f32.gmra.mxu0 %v578
  %v650 = vpop.f32.mrf.mxu0
  %v651 = vadd.f32 0.0, %v650
  %652 = vmatmul.f32.gmra.mxu0 %v581
  %v653 = vpop.f32.mrf.mxu0
  %v654 = vadd.f32 0.0, %v653
  %655 = vdwg.mxu0
  %v656 = vadd.f32 %v631, %v651
  %v657 = vadd.f32 %v632, %v654
  %658 = vmatpush.msra.mxu0 0.0
  %659 = vmatpush.msra.mxu0 0.0
  %660 = vmatpush.msra.mxu0 0.0
  %661 = vmatpush.msra.mxu0 0.0
  %662 = vmatpush.msra.mxu0 0.0
  %663 = vmatpush.msra.mxu0 0.0
  %664 = vmatpush.msra.mxu0 0.0
  %665 = vmatpush.msra.mxu0 0.0
  %666 = vmatpush.msra.mxu0 0.0
  %667 = vmatpush.msra.mxu0 0.0
  %668 = vmatpush.msra.mxu0 0.0
  %669 = vmatpush.msra.mxu0 0.0
  %670 = vmatpush.msra.mxu0 0.0
  %671 = vmatpush.msra.mxu0 0.0
  %672 = vmatpush.msra.mxu0 %v45
  %673 = vmatpush.msra.mxu0 %v44
  %674 = vmatmul.f32.gmra.mxu0 %v318
  %v675 = vpop.f32.mrf.mxu0
  %v676 = vadd.f32 0.0, %v675
  %677 = vmatmul.f32.gmra.mxu0 %v321
  %v678 = vpop.f32.mrf.mxu0
  %v679 = vadd.f32 0.0, %v678
  %680 = vdwg.mxu0
  %v682 = vsel %vm93, %v676, 0
  %v685 = vsel %vm93, %v679, 0
  %687 = vmatpush.msra.mxu0 0.0
  %688 = vmatpush.msra.mxu0 0.0
  %689 = vmatpush.msra.mxu0 0.0
  %690 = vmatpush.msra.mxu0 0.0
  %691 = vmatpush.msra.mxu0 0.0
  %692 = vmatpush.msra.mxu0 0.0
  %693 = vmatpush.msra.mxu0 0.0
  %694 = vmatpush.msra.mxu0 0.0
  %695 = vmatpush.msra.mxu0 %v354
  %696 = vmatpush.msra.mxu0 %v353
  %697 = vmatpush.msra.mxu0 %v352
  %698 = vmatpush.msra.mxu0 %v351
  %699 = vmatpush.msra.mxu0 %v350
  %700 = vmatpush.msra.mxu0 %v349
  %701 = vmatpush.msra.mxu0 %v348
  %702 = vmatpush.msra.mxu0 %v347
  %703 = vmatmul.f32.gmra.mxu0 %v682
  %v704 = vpop.f32.mrf.mxu0
  %v705 = vadd.f32 0.0, %v704
  %706 = vmatmul.f32.gmra.mxu0 %v685
  %v707 = vpop.f32.mrf.mxu0
  %v708 = vadd.f32 0.0, %v707
  %709 = vdwg.mxu0
  %v710 = vadd.f32 %v656, %v705
  %v711 = vadd.f32 %v657, %v708
  %712 = vmatpush.msra.mxu0 0.0
  %713 = vmatpush.msra.mxu0 0.0
  %714 = vmatpush.msra.mxu0 0.0
  %715 = vmatpush.msra.mxu0 0.0
  %716 = vmatpush.msra.mxu0 0.0
  %717 = vmatpush.msra.mxu0 0.0
  %718 = vmatpush.msra.mxu0 0.0
  %719 = vmatpush.msra.mxu0 0.0
  %720 = vmatpush.msra.mxu0 %v394
  %721 = vmatpush.msra.mxu0 %v393
  %722 = vmatpush.msra.mxu0 %v392
  %723 = vmatpush.msra.mxu0 %v391
  %724 = vmatpush.msra.mxu0 %v390
  %725 = vmatpush.msra.mxu0 %v389
  %726 = vmatpush.msra.mxu0 %v388
  %727 = vmatpush.msra.mxu0 %v387
  %728 = vmatmul.f32.gmra.mxu0 %v682
  %v729 = vpop.f32.mrf.mxu0
  %v730 = vadd.f32 0.0, %v729
  %731 = vmatmul.f32.gmra.mxu0 %v685
  %v732 = vpop.f32.mrf.mxu0
  %v733 = vadd.f32 0.0, %v732
  %734 = vdwg.mxu0
  %v735 = vadd.f32 %v710, %v730
  %v736 = vadd.f32 %v711, %v733
  %737 = vmatpush.msra.mxu0 0.0
  %738 = vmatpush.msra.mxu0 0.0
  %739 = vmatpush.msra.mxu0 0.0
  %740 = vmatpush.msra.mxu0 0.0
  %741 = vmatpush.msra.mxu0 0.0
  %742 = vmatpush.msra.mxu0 0.0
  %743 = vmatpush.msra.mxu0 0.0
  %744 = vmatpush.msra.mxu0 0.0
  %745 = vmatpush.msra.mxu0 %v428
  %746 = vmatpush.msra.mxu0 %v427
  %747 = vmatpush.msra.mxu0 %v426
  %748 = vmatpush.msra.mxu0 %v425
  %749 = vmatpush.msra.mxu0 %v424
  %750 = vmatpush.msra.mxu0 %v423
  %751 = vmatpush.msra.mxu0 %v422
  %752 = vmatpush.msra.mxu0 %v421
  %753 = vmatmul.f32.gmra.mxu0 %v682
  %v754 = vpop.f32.mrf.mxu0
  %v755 = vadd.f32 0.0, %v754
  %756 = vmatmul.f32.gmra.mxu0 %v685
  %v757 = vpop.f32.mrf.mxu0
  %v758 = vadd.f32 0.0, %v757
  %759 = vdwg.mxu0
  %v760 = vadd.f32 %v735, %v755
  %v761 = vadd.f32 %v736, %v758
  %v762 = vsel %vm93, %v452, 0.0
  %v763 = vsel %vm93, %v453, 0.0
  %v764 = vadd.f32 %v762, %v763
  %v765 = vrot.slane %v764, 4
  %v766 = vadd.f32 %v764, %v765
  %v767 = vrot.slane %v766, 2
  %v768 = vadd.f32 %v766, %v767
  %v769 = vrot.slane %v768, 1
  %v770 = vadd.f32 %v768, %v769
  %v771 = vadd.f32 %v770, 0.0
  %v772 = vmul.f32 %v452, %v452
  %v773 = vmul.f32 %v453, %v453
  %v774 = vsel %vm93, %v772, 0.0
  %v775 = vsel %vm93, %v773, 0.0
  %v776 = vadd.f32 %v774, %v775
  %v777 = vrot.slane %v776, 4
  %v778 = vadd.f32 %v776, %v777
  %v779 = vrot.slane %v778, 2
  %v780 = vadd.f32 %v778, %v779
  %v781 = vrot.slane %v780, 1
  %v782 = vadd.f32 %v780, %v781
  %v783 = vadd.f32 %v782, 0.0
  %v784 = vsel %vm93, %v760, 0.0
  %v785 = vsel %vm93, %v761, 0.0
  %v786 = vadd.f32 %v784, %v785
  %v787 = vrot.slane %v786, 4
  %v788 = vadd.f32 %v786, %v787
  %v789 = vrot.slane %v788, 2
  %v790 = vadd.f32 %v788, %v789
  %v791 = vrot.slane %v790, 1
  %v792 = vadd.f32 %v790, %v791
  %v793 = vadd.f32 %v771, %v792
  %v794 = vmul.f32 %v760, %v760
  %v795 = vmul.f32 %v761, %v761
  %v796 = vsel %vm93, %v794, 0.0
  %v797 = vsel %vm93, %v795, 0.0
  %v798 = vadd.f32 %v796, %v797
  %v799 = vrot.slane %v798, 4
  %v800 = vadd.f32 %v798, %v799
  %v801 = vrot.slane %v800, 2
  %v802 = vadd.f32 %v800, %v801
  %v803 = vrot.slane %v802, 1
  %v804 = vadd.f32 %v802, %v803
  %v805 = vadd.f32 %v783, %v804
  %s806 = scalar_lea.vmem %s1, 1152
  %v807 = vld [vmem:[%s806] sm:$0xff]
  %v808 = vld [vmem:[%s806 + $0x8] sm:$0xff]
  %v809 = vld [vmem:[%s806 + $0x10] sm:$0xff]
  %v810 = vld [vmem:[%s806 + $0x18] sm:$0xff]
  %v811 = vld [vmem:[%s806 + $0x20] sm:$0xff]
  %v812 = vld [vmem:[%s806 + $0x28] sm:$0xff]
  %v813 = vld [vmem:[%s806 + $0x30] sm:$0xff]
  %v814 = vld [vmem:[%s806 + $0x38] sm:$0xff]
  %v816 = vsel %vm93, %v793, 0
  %818 = vmatpush.msra.mxu0 0.0
  %819 = vmatpush.msra.mxu0 0.0
  %820 = vmatpush.msra.mxu0 0.0
  %821 = vmatpush.msra.mxu0 0.0
  %822 = vmatpush.msra.mxu0 0.0
  %823 = vmatpush.msra.mxu0 0.0
  %824 = vmatpush.msra.mxu0 0.0
  %825 = vmatpush.msra.mxu0 0.0
  %826 = vmatpush.msra.mxu0 %v814
  %827 = vmatpush.msra.mxu0 %v813
  %828 = vmatpush.msra.mxu0 %v812
  %829 = vmatpush.msra.mxu0 %v811
  %830 = vmatpush.msra.mxu0 %v810
  %831 = vmatpush.msra.mxu0 %v809
  %832 = vmatpush.msra.mxu0 %v808
  %833 = vmatpush.msra.mxu0 %v807
  %834 = vmatmul.f32.gmra.mxu0 %v816
  %v835 = vpop.f32.mrf.mxu0
  %v836 = vadd.f32 0.0, %v835
  %837 = vdwg.mxu0
  %v839 = vsel %vm93, %v805, 0
  %841 = vmatpush.msra.mxu0 0.0
  %842 = vmatpush.msra.mxu0 0.0
  %843 = vmatpush.msra.mxu0 0.0
  %844 = vmatpush.msra.mxu0 0.0
  %845 = vmatpush.msra.mxu0 0.0
  %846 = vmatpush.msra.mxu0 0.0
  %847 = vmatpush.msra.mxu0 0.0
  %848 = vmatpush.msra.mxu0 0.0
  %849 = vmatpush.msra.mxu0 %v814
  %850 = vmatpush.msra.mxu0 %v813
  %851 = vmatpush.msra.mxu0 %v812
  %852 = vmatpush.msra.mxu0 %v811
  %853 = vmatpush.msra.mxu0 %v810
  %854 = vmatpush.msra.mxu0 %v809
  %855 = vmatpush.msra.mxu0 %v808
  %856 = vmatpush.msra.mxu0 %v807
  %857 = vmatmul.f32.gmra.mxu0 %v839
  %v858 = vpop.f32.mrf.mxu0
  %v859 = vadd.f32 0.0, %v858
  %860 = vdwg.mxu0
  %v861 = vmul.f32 %v836, %v836
  %v862 = vsub.f32 %v859, %v861
  %v863 = vld [vmem:[%s2] sm:$0x1]
  %v864 = vld [vmem:[%s2 + $0x1] sm:$0x1]
  %v865 = vadd.f32 %v862, 1e-05
  %v866 = vrsqrt.pop %v865
  %v867 = vmul.f32 %v866, %v865
  %v868 = vmul.f32 %v867, %v866
  %v869 = vmul.f32 0.5, %v868
  %v870 = vsub.f32 1.5, %v869
  %v871 = vmul.f32 %v866, %v870
  %vm872 = vweird.f32 %v865
  %vm873 = vweird.f32 %v866
  %vm874 = vmor %vm872, %vm873
  %v875 = vsel %vm874, %v866, %v871
  %v876 = vmul.f32 %v863, %v875
  %v877 = vmul.f32 %v836, %v876
  %v878 = vsub.f32 %v864, %v877
  %v879 = vperm.slane %v876, 0
  %v880 = vmul.f32 %v452, %v879
  %v881 = vmul.f32 %v453, %v879
  %v882 = vperm.slane %v878, 0
  %v883 = vadd.f32 %v880, %v882
  %v884 = vadd.f32 %v881, %v882
  %v885 = vmax.f32 %v883, 0.0
  %v886 = vmax.f32 %v884, 0.0
  %v887 = vmul.f32 %v760, %v879
  %v888 = vmul.f32 %v761, %v879
  %v889 = vadd.f32 %v887, %v882
  %v890 = vadd.f32 %v888, %v882
  %v891 = vmax.f32 %v889, 0.0
  %v892 = vmax.f32 %v890, 0.0
  %893 = vmatpush.msra.mxu0 0.0
  %894 = vmatpush.msra.mxu0 0.0
  %895 = vmatpush.msra.mxu0 0.0
  %896 = vmatpush.msra.mxu0 0.0
  %897 = vmatpush.msra.mxu0 0.0
  %898 = vmatpush.msra.mxu0 0.0
  %899 = vmatpush.msra.mxu0 0.0
  %900 = vmatpush.msra.mxu0 0.0
  %901 = vmatpush.msra.mxu0 0.0
  %902 = vmatpush.msra.mxu0 0.0
  %903 = vmatpush.msra.mxu0 0.0
  %904 = vmatpush.msra.mxu0 0.0
  %905 = vmatpush.msra.mxu0 0.0
  %906 = vmatpush.msra.mxu0 0.0
  %907 = vmatpush.msra.mxu0 %v886
  %908 = vmatpush.msra.mxu0 %v885
  %909 = vmatmul.f32.gmra.mxu0 %v48
  %v910 = vpop.f32.mrf.mxu0
  %v911 = vadd.f32 0.0, %v910
  %912 = vmatmul.f32.gmra.mxu0 %v51
  %v913 = vpop.f32.mrf.mxu0
  %v914 = vadd.f32 0.0, %v913
  %915 = vdwg.mxu0
  %s916 = scalar_lea.vmem %s1, 576
  %v917 = vld [vmem:[%s916] sm:$0xff]
  %v918 = vld [vmem:[%s916 + $0x8] sm:$0xff]
  %v919 = vld [vmem:[%s916 + $0x10] sm:$0xff]
  %v920 = vld [vmem:[%s916 + $0x18] sm:$0xff]
  %v921 = vld [vmem:[%s916 + $0x20] sm:$0xff]
  %v922 = vld [vmem:[%s916 + $0x28] sm:$0xff]
  %v923 = vld [vmem:[%s916 + $0x30] sm:$0xff]
  %v924 = vld [vmem:[%s916 + $0x38] sm:$0xff]
  %s925 = scalar_lea.vmem %s1, 640
  %v926 = vld [vmem:[%s925] sm:$0xff]
  %v927 = vld [vmem:[%s925 + $0x8] sm:$0xff]
  %v928 = vld [vmem:[%s925 + $0x10] sm:$0xff]
  %v929 = vld [vmem:[%s925 + $0x18] sm:$0xff]
  %v930 = vld [vmem:[%s925 + $0x20] sm:$0xff]
  %v931 = vld [vmem:[%s925 + $0x28] sm:$0xff]
  %v932 = vld [vmem:[%s925 + $0x30] sm:$0xff]
  %v933 = vld [vmem:[%s925 + $0x38] sm:$0xff]
  %v935 = vsel %vm93, %v911, 0
  %v938 = vsel %vm93, %v914, 0
  %940 = vmatpush.msra.mxu0 0.0
  %941 = vmatpush.msra.mxu0 0.0
  %942 = vmatpush.msra.mxu0 0.0
  %943 = vmatpush.msra.mxu0 0.0
  %944 = vmatpush.msra.mxu0 0.0
  %945 = vmatpush.msra.mxu0 0.0
  %946 = vmatpush.msra.mxu0 0.0
  %947 = vmatpush.msra.mxu0 0.0
  %948 = vmatpush.msra.mxu0 %v933
  %949 = vmatpush.msra.mxu0 %v932
  %950 = vmatpush.msra.mxu0 %v931
  %951 = vmatpush.msra.mxu0 %v930
  %952 = vmatpush.msra.mxu0 %v929
  %953 = vmatpush.msra.mxu0 %v928
  %954 = vmatpush.msra.mxu0 %v927
  %955 = vmatpush.msra.mxu0 %v926
  %956 = vmatmul.f32.gmra.mxu0 %v935
  %v957 = vpop.f32.mrf.mxu0
  %v958 = vadd.f32 0.0, %v957
  %959 = vmatmul.f32.gmra.mxu0 %v938
  %v960 = vpop.f32.mrf.mxu0
  %v961 = vadd.f32 0.0, %v960
  %962 = vdwg.mxu0
  %963 = vmatpush.msra.mxu0 0.0
  %964 = vmatpush.msra.mxu0 0.0
  %965 = vmatpush.msra.mxu0 0.0
  %966 = vmatpush.msra.mxu0 0.0
  %967 = vmatpush.msra.mxu0 0.0
  %968 = vmatpush.msra.mxu0 0.0
  %969 = vmatpush.msra.mxu0 0.0
  %970 = vmatpush.msra.mxu0 0.0
  %971 = vmatpush.msra.mxu0 %v924
  %972 = vmatpush.msra.mxu0 %v923
  %973 = vmatpush.msra.mxu0 %v922
  %974 = vmatpush.msra.mxu0 %v921
  %975 = vmatpush.msra.mxu0 %v920
  %976 = vmatpush.msra.mxu0 %v919
  %977 = vmatpush.msra.mxu0 %v918
  %978 = vmatpush.msra.mxu0 %v917
  %979 = vmatmul.f32.gmra.mxu0 %v935
  %v980 = vpop.f32.mrf.mxu0
  %v981 = vadd.f32 %v958, %v980
  %982 = vmatmul.f32.gmra.mxu0 %v938
  %v983 = vpop.f32.mrf.mxu0
  %v984 = vadd.f32 %v961, %v983
  %985 = vdwg.mxu0
  %s986 = scalar_lea.vmem %s1, 704
  %v987 = vld [vmem:[%s986] sm:$0xff]
  %v988 = vld [vmem:[%s986 + $0x8] sm:$0xff]
  %v989 = vld [vmem:[%s986 + $0x10] sm:$0xff]
  %v990 = vld [vmem:[%s986 + $0x18] sm:$0xff]
  %v991 = vld [vmem:[%s986 + $0x20] sm:$0xff]
  %v992 = vld [vmem:[%s986 + $0x28] sm:$0xff]
  %v993 = vld [vmem:[%s986 + $0x30] sm:$0xff]
  %v994 = vld [vmem:[%s986 + $0x38] sm:$0xff]
  %995 = vmatpush.msra.mxu0 0.0
  %996 = vmatpush.msra.mxu0 0.0
  %997 = vmatpush.msra.mxu0 0.0
  %998 = vmatpush.msra.mxu0 0.0
  %999 = vmatpush.msra.mxu0 0.0
  %1000 = vmatpush.msra.mxu0 0.0
  %1001 = vmatpush.msra.mxu0 0.0
  %1002 = vmatpush.msra.mxu0 0.0
  %1003 = vmatpush.msra.mxu0 %v994
  %1004 = vmatpush.msra.mxu0 %v993
  %1005 = vmatpush.msra.mxu0 %v992
  %1006 = vmatpush.msra.mxu0 %v991
  %1007 = vmatpush.msra.mxu0 %v990
  %1008 = vmatpush.msra.mxu0 %v989
  %1009 = vmatpush.msra.mxu0 %v988
  %1010 = vmatpush.msra.mxu0 %v987
  %1011 = vmatmul.f32.gmra.mxu0 %v935
  %v1012 = vpop.f32.mrf.mxu0
  %v1013 = vadd.f32 0.0, %v1012
  %1014 = vmatmul.f32.gmra.mxu0 %v938
  %v1015 = vpop.f32.mrf.mxu0
  %v1016 = vadd.f32 0.0, %v1015
  %1017 = vdwg.mxu0
  %v1018 = vadd.f32 %v981, %v1013
  %v1019 = vadd.f32 %v984, %v1016
  %1020 = vmatpush.msra.mxu0 0.0
  %1021 = vmatpush.msra.mxu0 0.0
  %1022 = vmatpush.msra.mxu0 0.0
  %1023 = vmatpush.msra.mxu0 0.0
  %1024 = vmatpush.msra.mxu0 0.0
  %1025 = vmatpush.msra.mxu0 0.0
  %1026 = vmatpush.msra.mxu0 0.0
  %1027 = vmatpush.msra.mxu0 0.0
  %1028 = vmatpush.msra.mxu0 0.0
  %1029 = vmatpush.msra.mxu0 0.0
  %1030 = vmatpush.msra.mxu0 0.0
  %1031 = vmatpush.msra.mxu0 0.0
  %1032 = vmatpush.msra.mxu0 0.0
  %1033 = vmatpush.msra.mxu0 0.0
  %1034 = vmatpush.msra.mxu0 %v886
  %1035 = vmatpush.msra.mxu0 %v885
  %1036 = vmatmul.f32.gmra.mxu0 %v181
  %v1037 = vpop.f32.mrf.mxu0
  %v1038 = vadd.f32 0.0, %v1037
  %1039 = vmatmul.f32.gmra.mxu0 %v184
  %v1040 = vpop.f32.mrf.mxu0
  %v1041 = vadd.f32 0.0, %v1040
  %1042 = vdwg.mxu0
  %s1043 = scalar_lea.vmem %s1, 768
  %v1044 = vld [vmem:[%s1043] sm:$0xff]
  %v1045 = vld [vmem:[%s1043 + $0x8] sm:$0xff]
  %v1046 = vld [vmem:[%s1043 + $0x10] sm:$0xff]
  %v1047 = vld [vmem:[%s1043 + $0x18] sm:$0xff]
  %v1048 = vld [vmem:[%s1043 + $0x20] sm:$0xff]
  %v1049 = vld [vmem:[%s1043 + $0x28] sm:$0xff]
  %v1050 = vld [vmem:[%s1043 + $0x30] sm:$0xff]
  %v1051 = vld [vmem:[%s1043 + $0x38] sm:$0xff]
  %v1053 = vsel %vm93, %v1038, 0
  %v1056 = vsel %vm93, %v1041, 0
  %1058 = vmatpush.msra.mxu0 0.0
  %1059 = vmatpush.msra.mxu0 0.0
  %1060 = vmatpush.msra.mxu0 0.0
  %1061 = vmatpush.msra.mxu0 0.0
  %1062 = vmatpush.msra.mxu0 0.0
  %1063 = vmatpush.msra.mxu0 0.0
  %1064 = vmatpush.msra.mxu0 0.0
  %1065 = vmatpush.msra.mxu0 0.0
  %1066 = vmatpush.msra.mxu0 %v1051
  %1067 = vmatpush.msra.mxu0 %v1050
  %1068 = vmatpush.msra.mxu0 %v1049
  %1069 = vmatpush.msra.mxu0 %v1048
  %1070 = vmatpush.msra.mxu0 %v1047
  %1071 = vmatpush.msra.mxu0 %v1046
  %1072 = vmatpush.msra.mxu0 %v1045
  %1073 = vmatpush.msra.mxu0 %v1044
  %1074 = vmatmul.f32.gmra.mxu0 %v1053
  %v1075 = vpop.f32.mrf.mxu0
  %v1076 = vadd.f32 0.0, %v1075
  %1077 = vmatmul.f32.gmra.mxu0 %v1056
  %v1078 = vpop.f32.mrf.mxu0
  %v1079 = vadd.f32 0.0, %v1078
  %1080 = vdwg.mxu0
  %v1081 = vadd.f32 %v1018, %v1076
  %v1082 = vadd.f32 %v1019, %v1079
  %s1083 = scalar_lea.vmem %s1, 832
  %v1084 = vld [vmem:[%s1083] sm:$0xff]
  %v1085 = vld [vmem:[%s1083 + $0x8] sm:$0xff]
  %v1086 = vld [vmem:[%s1083 + $0x10] sm:$0xff]
  %v1087 = vld [vmem:[%s1083 + $0x18] sm:$0xff]
  %v1088 = vld [vmem:[%s1083 + $0x20] sm:$0xff]
  %v1089 = vld [vmem:[%s1083 + $0x28] sm:$0xff]
  %v1090 = vld [vmem:[%s1083 + $0x30] sm:$0xff]
  %v1091 = vld [vmem:[%s1083 + $0x38] sm:$0xff]
  %1092 = vmatpush.msra.mxu0 0.0
  %1093 = vmatpush.msra.mxu0 0.0
  %1094 = vmatpush.msra.mxu0 0.0
  %1095 = vmatpush.msra.mxu0 0.0
  %1096 = vmatpush.msra.mxu0 0.0
  %1097 = vmatpush.msra.mxu0 0.0
  %1098 = vmatpush.msra.mxu0 0.0
  %1099 = vmatpush.msra.mxu0 0.0
  %1100 = vmatpush.msra.mxu0 %v1091
  %1101 = vmatpush.msra.mxu0 %v1090
  %1102 = vmatpush.msra.mxu0 %v1089
  %1103 = vmatpush.msra.mxu0 %v1088
  %1104 = vmatpush.msra.mxu0 %v1087
  %1105 = vmatpush.msra.mxu0 %v1086
  %1106 = vmatpush.msra.mxu0 %v1085
  %1107 = vmatpush.msra.mxu0 %v1084
  %1108 = vmatmul.f32.gmra.mxu0 %v1053
  %v1109 = vpop.f32.mrf.mxu0
  %v1110 = vadd.f32 0.0, %v1109
  %1111 = vmatmul.f32.gmra.mxu0 %v1056
  %v1112 = vpop.f32.mrf.mxu0
  %v1113 = vadd.f32 0.0, %v1112
  %1114 = vdwg.mxu0
  %v1115 = vadd.f32 %v1081, %v1110
  %v1116 = vadd.f32 %v1082, %v1113
  %s1117 = scalar_lea.vmem %s1, 896
  %v1118 = vld [vmem:[%s1117] sm:$0xff]
  %v1119 = vld [vmem:[%s1117 + $0x8] sm:$0xff]
  %v1120 = vld [vmem:[%s1117 + $0x10] sm:$0xff]
  %v1121 = vld [vmem:[%s1117 + $0x18] sm:$0xff]
  %v1122 = vld [vmem:[%s1117 + $0x20] sm:$0xff]
  %v1123 = vld [vmem:[%s1117 + $0x28] sm:$0xff]
  %v1124 = vld [vmem:[%s1117 + $0x30] sm:$0xff]
  %v1125 = vld [vmem:[%s1117 + $0x38] sm:$0xff]
  %1126 = vmatpush.msra.mxu0 0.0
  %1127 = vmatpush.msra.mxu0 0.0
  %1128 = vmatpush.msra.mxu0 0.0
  %1129 = vmatpush.msra.mxu0 0.0
  %1130 = vmatpush.msra.mxu0 0.0
  %1131 = vmatpush.msra.mxu0 0.0
  %1132 = vmatpush.msra.mxu0 0.0
  %1133 = vmatpush.msra.mxu0 0.0
  %1134 = vmatpush.msra.mxu0 %v1125
  %1135 = vmatpush.msra.mxu0 %v1124
  %1136 = vmatpush.msra.mxu0 %v1123
  %1137 = vmatpush.msra.mxu0 %v1122
  %1138 = vmatpush.msra.mxu0 %v1121
  %1139 = vmatpush.msra.mxu0 %v1120
  %1140 = vmatpush.msra.mxu0 %v1119
  %1141 = vmatpush.msra.mxu0 %v1118
  %1142 = vmatmul.f32.gmra.mxu0 %v1053
  %v1143 = vpop.f32.mrf.mxu0
  %v1144 = vadd.f32 0.0, %v1143
  %1145 = vmatmul.f32.gmra.mxu0 %v1056
  %v1146 = vpop.f32.mrf.mxu0
  %v1147 = vadd.f32 0.0, %v1146
  %1148 = vdwg.mxu0
  %v1149 = vadd.f32 %v1115, %v1144
  %v1150 = vadd.f32 %v1116, %v1147
  %1151 = vmatpush.msra.mxu0 0.0
  %1152 = vmatpush.msra.mxu0 0.0
  %1153 = vmatpush.msra.mxu0 0.0
  %1154 = vmatpush.msra.mxu0 0.0
  %1155 = vmatpush.msra.mxu0 0.0
  %1156 = vmatpush.msra.mxu0 0.0
  %1157 = vmatpush.msra.mxu0 0.0
  %1158 = vmatpush.msra.mxu0 0.0
  %1159 = vmatpush.msra.mxu0 0.0
  %1160 = vmatpush.msra.mxu0 0.0
  %1161 = vmatpush.msra.mxu0 0.0
  %1162 = vmatpush.msra.mxu0 0.0
  %1163 = vmatpush.msra.mxu0 0.0
  %1164 = vmatpush.msra.mxu0 0.0
  %1165 = vmatpush.msra.mxu0 %v886
  %1166 = vmatpush.msra.mxu0 %v885
  %1167 = vmatmul.f32.gmra.mxu0 %v318
  %v1168 = vpop.f32.mrf.mxu0
  %v1169 = vadd.f32 0.0, %v1168
  %1170 = vmatmul.f32.gmra.mxu0 %v321
  %v1171 = vpop.f32.mrf.mxu0
  %v1172 = vadd.f32 0.0, %v1171
  %1173 = vdwg.mxu0
  %s1174 = scalar_lea.vmem %s1, 960
  %v1175 = vld [vmem:[%s1174] sm:$0xff]
  %v1176 = vld [vmem:[%s1174 + $0x8] sm:$0xff]
  %v1177 = vld [vmem:[%s1174 + $0x10] sm:$0xff]
  %v1178 = vld [vmem:[%s1174 + $0x18] sm:$0xff]
  %v1179 = vld [vmem:[%s1174 + $0x20] sm:$0xff]
  %v1180 = vld [vmem:[%s1174 + $0x28] sm:$0xff]
  %v1181 = vld [vmem:[%s1174 + $0x30] sm:$0xff]
  %v1182 = vld [vmem:[%s1174 + $0x38] sm:$0xff]
  %v1184 = vsel %vm93, %v1169, 0
  %v1187 = vsel %vm93, %v1172, 0
  %1189 = vmatpush.msra.mxu0 0.0
  %1190 = vmatpush.msra.mxu0 0.0
  %1191 = vmatpush.msra.mxu0 0.0
  %1192 = vmatpush.msra.mxu0 0.0
  %1193 = vmatpush.msra.mxu0 0.0
  %1194 = vmatpush.msra.mxu0 0.0
  %1195 = vmatpush.msra.mxu0 0.0
  %1196 = vmatpush.msra.mxu0 0.0
  %1197 = vmatpush.msra.mxu0 %v1182
  %1198 = vmatpush.msra.mxu0 %v1181
  %1199 = vmatpush.msra.mxu0 %v1180
  %1200 = vmatpush.msra.mxu0 %v1179
  %1201 = vmatpush.msra.mxu0 %v1178
  %1202 = vmatpush.msra.mxu0 %v1177
  %1203 = vmatpush.msra.mxu0 %v1176
  %1204 = vmatpush.msra.mxu0 %v1175
  %1205 = vmatmul.f32.gmra.mxu0 %v1184
  %v1206 = vpop.f32.mrf.mxu0
  %v1207 = vadd.f32 0.0, %v1206
  %1208 = vmatmul.f32.gmra.mxu0 %v1187
  %v1209 = vpop.f32.mrf.mxu0
  %v1210 = vadd.f32 0.0, %v1209
  %1211 = vdwg.mxu0
  %v1212 = vadd.f32 %v1149, %v1207
  %v1213 = vadd.f32 %v1150, %v1210
  %s1214 = scalar_lea.vmem %s1, 1024
  %v1215 = vld [vmem:[%s1214] sm:$0xff]
  %v1216 = vld [vmem:[%s1214 + $0x8] sm:$0xff]
  %v1217 = vld [vmem:[%s1214 + $0x10] sm:$0xff]
  %v1218 = vld [vmem:[%s1214 + $0x18] sm:$0xff]
  %v1219 = vld [vmem:[%s1214 + $0x20] sm:$0xff]
  %v1220 = vld [vmem:[%s1214 + $0x28] sm:$0xff]
  %v1221 = vld [vmem:[%s1214 + $0x30] sm:$0xff]
  %v1222 = vld [vmem:[%s1214 + $0x38] sm:$0xff]
  %1223 = vmatpush.msra.mxu0 0.0
  %1224 = vmatpush.msra.mxu0 0.0
  %1225 = vmatpush.msra.mxu0 0.0
  %1226 = vmatpush.msra.mxu0 0.0
  %1227 = vmatpush.msra.mxu0 0.0
  %1228 = vmatpush.msra.mxu0 0.0
  %1229 = vmatpush.msra.mxu0 0.0
  %1230 = vmatpush.msra.mxu0 0.0
  %1231 = vmatpush.msra.mxu0 %v1222
  %1232 = vmatpush.msra.mxu0 %v1221
  %1233 = vmatpush.msra.mxu0 %v1220
  %1234 = vmatpush.msra.mxu0 %v1219
  %1235 = vmatpush.msra.mxu0 %v1218
  %1236 = vmatpush.msra.mxu0 %v1217
  %1237 = vmatpush.msra.mxu0 %v1216
  %1238 = vmatpush.msra.mxu0 %v1215
  %1239 = vmatmul.f32.gmra.mxu0 %v1184
  %v1240 = vpop.f32.mrf.mxu0
  %v1241 = vadd.f32 0.0, %v1240
  %1242 = vmatmul.f32.gmra.mxu0 %v1187
  %v1243 = vpop.f32.mrf.mxu0
  %v1244 = vadd.f32 0.0, %v1243
  %1245 = vdwg.mxu0
  %v1246 = vadd.f32 %v1212, %v1241
  %v1247 = vadd.f32 %v1213, %v1244
  %s1248 = scalar_lea.vmem %s1, 1088
  %v1249 = vld [vmem:[%s1248] sm:$0xff]
  %v1250 = vld [vmem:[%s1248 + $0x8] sm:$0xff]
  %v1251 = vld [vmem:[%s1248 + $0x10] sm:$0xff]
  %v1252 = vld [vmem:[%s1248 + $0x18] sm:$0xff]
  %v1253 = vld [vmem:[%s1248 + $0x20] sm:$0xff]
  %v1254 = vld [vmem:[%s1248 + $0x28] sm:$0xff]
  %v1255 = vld [vmem:[%s1248 + $0x30] sm:$0xff]
  %v1256 = vld [vmem:[%s1248 + $0x38] sm:$0xff]
  %1257 = vmatpush.msra.mxu0 0.0
  %1258 = vmatpush.msra.mxu0 0.0
  %1259 = vmatpush.msra.mxu0 0.0
  %1260 = vmatpush.msra.mxu0 0.0
  %1261 = vmatpush.msra.mxu0 0.0
  %1262 = vmatpush.msra.mxu0 0.0
  %1263 = vmatpush.msra.mxu0 0.0
  %1264 = vmatpush.msra.mxu0 0.0
  %1265 = vmatpush.msra.mxu0 %v1256
  %1266 = vmatpush.msra.mxu0 %v1255
  %1267 = vmatpush.msra.mxu0 %v1254
  %1268 = vmatpush.msra.mxu0 %v1253
  %1269 = vmatpush.msra.mxu0 %v1252
  %1270 = vmatpush.msra.mxu0 %v1251
  %1271 = vmatpush.msra.mxu0 %v1250
  %1272 = vmatpush.msra.mxu0 %v1249
  %1273 = vmatmul.f32.gmra.mxu0 %v1184
  %v1274 = vpop.f32.mrf.mxu0
  %v1275 = vadd.f32 0.0, %v1274
  %1276 = vmatmul.f32.gmra.mxu0 %v1187
  %v1277 = vpop.f32.mrf.mxu0
  %v1278 = vadd.f32 0.0, %v1277
  %1279 = vdwg.mxu0
  %v1280 = vadd.f32 %v1246, %v1275
  %v1281 = vadd.f32 %v1247, %v1278
  %1282 = vmatpush.msra.mxu0 0.0
  %1283 = vmatpush.msra.mxu0 0.0
  %1284 = vmatpush.msra.mxu0 0.0
  %1285 = vmatpush.msra.mxu0 0.0
  %1286 = vmatpush.msra.mxu0 0.0
  %1287 = vmatpush.msra.mxu0 0.0
  %1288 = vmatpush.msra.mxu0 0.0
  %1289 = vmatpush.msra.mxu0 0.0
  %1290 = vmatpush.msra.mxu0 0.0
  %1291 = vmatpush.msra.mxu0 0.0
  %1292 = vmatpush.msra.mxu0 0.0
  %1293 = vmatpush.msra.mxu0 0.0
  %1294 = vmatpush.msra.mxu0 0.0
  %1295 = vmatpush.msra.mxu0 0.0
  %1296 = vmatpush.msra.mxu0 %v892
  %1297 = vmatpush.msra.mxu0 %v891
  %1298 = vmatmul.f32.gmra.mxu0 %v48
  %v1299 = vpop.f32.mrf.mxu0
  %v1300 = vadd.f32 0.0, %v1299
  %1301 = vmatmul.f32.gmra.mxu0 %v51
  %v1302 = vpop.f32.mrf.mxu0
  %v1303 = vadd.f32 0.0, %v1302
  %1304 = vdwg.mxu0
  %v1306 = vsel %vm93, %v1300, 0
  %v1309 = vsel %vm93, %v1303, 0
  %1311 = vmatpush.msra.mxu0 0.0
  %1312 = vmatpush.msra.mxu0 0.0
  %1313 = vmatpush.msra.mxu0 0.0
  %1314 = vmatpush.msra.mxu0 0.0
  %1315 = vmatpush.msra.mxu0 0.0
  %1316 = vmatpush.msra.mxu0 0.0
  %1317 = vmatpush.msra.mxu0 0.0
  %1318 = vmatpush.msra.mxu0 0.0
  %1319 = vmatpush.msra.mxu0 %v933
  %1320 = vmatpush.msra.mxu0 %v932
  %1321 = vmatpush.msra.mxu0 %v931
  %1322 = vmatpush.msra.mxu0 %v930
  %1323 = vmatpush.msra.mxu0 %v929
  %1324 = vmatpush.msra.mxu0 %v928
  %1325 = vmatpush.msra.mxu0 %v927
  %1326 = vmatpush.msra.mxu0 %v926
  %1327 = vmatmul.f32.gmra.mxu0 %v1306
  %v1328 = vpop.f32.mrf.mxu0
  %v1329 = vadd.f32 0.0, %v1328
  %1330 = vmatmul.f32.gmra.mxu0 %v1309
  %v1331 = vpop.f32.mrf.mxu0
  %v1332 = vadd.f32 0.0, %v1331
  %1333 = vdwg.mxu0
  %1334 = vmatpush.msra.mxu0 0.0
  %1335 = vmatpush.msra.mxu0 0.0
  %1336 = vmatpush.msra.mxu0 0.0
  %1337 = vmatpush.msra.mxu0 0.0
  %1338 = vmatpush.msra.mxu0 0.0
  %1339 = vmatpush.msra.mxu0 0.0
  %1340 = vmatpush.msra.mxu0 0.0
  %1341 = vmatpush.msra.mxu0 0.0
  %1342 = vmatpush.msra.mxu0 %v924
  %1343 = vmatpush.msra.mxu0 %v923
  %1344 = vmatpush.msra.mxu0 %v922
  %1345 = vmatpush.msra.mxu0 %v921
  %1346 = vmatpush.msra.mxu0 %v920
  %1347 = vmatpush.msra.mxu0 %v919
  %1348 = vmatpush.msra.mxu0 %v918
  %1349 = vmatpush.msra.mxu0 %v917
  %1350 = vmatmul.f32.gmra.mxu0 %v1306
  %v1351 = vpop.f32.mrf.mxu0
  %v1352 = vadd.f32 %v1329, %v1351
  %1353 = vmatmul.f32.gmra.mxu0 %v1309
  %v1354 = vpop.f32.mrf.mxu0
  %v1355 = vadd.f32 %v1332, %v1354
  %1356 = vdwg.mxu0
  %1357 = vmatpush.msra.mxu0 0.0
  %1358 = vmatpush.msra.mxu0 0.0
  %1359 = vmatpush.msra.mxu0 0.0
  %1360 = vmatpush.msra.mxu0 0.0
  %1361 = vmatpush.msra.mxu0 0.0
  %1362 = vmatpush.msra.mxu0 0.0
  %1363 = vmatpush.msra.mxu0 0.0
  %1364 = vmatpush.msra.mxu0 0.0
  %1365 = vmatpush.msra.mxu0 %v994
  %1366 = vmatpush.msra.mxu0 %v993
  %1367 = vmatpush.msra.mxu0 %v992
  %1368 = vmatpush.msra.mxu0 %v991
  %1369 = vmatpush.msra.mxu0 %v990
  %1370 = vmatpush.msra.mxu0 %v989
  %1371 = vmatpush.msra.mxu0 %v988
  %1372 = vmatpush.msra.mxu0 %v987
  %1373 = vmatmul.f32.gmra.mxu0 %v1306
  %v1374 = vpop.f32.mrf.mxu0
  %v1375 = vadd.f32 0.0, %v1374
  %1376 = vmatmul.f32.gmra.mxu0 %v1309
  %v1377 = vpop.f32.mrf.mxu0
  %v1378 = vadd.f32 0.0, %v1377
  %1379 = vdwg.mxu0
  %v1380 = vadd.f32 %v1352, %v1375
  %v1381 = vadd.f32 %v1355, %v1378
  %1382 = vmatpush.msra.mxu0 0.0
  %1383 = vmatpush.msra.mxu0 0.0
  %1384 = vmatpush.msra.mxu0 0.0
  %1385 = vmatpush.msra.mxu0 0.0
  %1386 = vmatpush.msra.mxu0 0.0
  %1387 = vmatpush.msra.mxu0 0.0
  %1388 = vmatpush.msra.mxu0 0.0
  %1389 = vmatpush.msra.mxu0 0.0
  %1390 = vmatpush.msra.mxu0 0.0
  %1391 = vmatpush.msra.mxu0 0.0
  %1392 = vmatpush.msra.mxu0 0.0
  %1393 = vmatpush.msra.mxu0 0.0
  %1394 = vmatpush.msra.mxu0 0.0
  %1395 = vmatpush.msra.mxu0 0.0
  %1396 = vmatpush.msra.mxu0 %v892
  %1397 = vmatpush.msra.mxu0 %v891
  %1398 = vmatmul.f32.gmra.mxu0 %v181
  %v1399 = vpop.f32.mrf.mxu0
  %v1400 = vadd.f32 0.0, %v1399
  %1401 = vmatmul.f32.gmra.mxu0 %v184
  %v1402 = vpop.f32.mrf.mxu0
  %v1403 = vadd.f32 0.0, %v1402
  %1404 = vdwg.mxu0
  %v1406 = vsel %vm93, %v1400, 0
  %v1409 = vsel %vm93, %v1403, 0
  %1411 = vmatpush.msra.mxu0 0.0
  %1412 = vmatpush.msra.mxu0 0.0
  %1413 = vmatpush.msra.mxu0 0.0
  %1414 = vmatpush.msra.mxu0 0.0
  %1415 = vmatpush.msra.mxu0 0.0
  %1416 = vmatpush.msra.mxu0 0.0
  %1417 = vmatpush.msra.mxu0 0.0
  %1418 = vmatpush.msra.mxu0 0.0
  %1419 = vmatpush.msra.mxu0 %v1051
  %1420 = vmatpush.msra.mxu0 %v1050
  %1421 = vmatpush.msra.mxu0 %v1049
  %1422 = vmatpush.msra.mxu0 %v1048
  %1423 = vmatpush.msra.mxu0 %v1047
  %1424 = vmatpush.msra.mxu0 %v1046
  %1425 = vmatpush.msra.mxu0 %v1045
  %1426 = vmatpush.msra.mxu0 %v1044
  %1427 = vmatmul.f32.gmra.mxu0 %v1406
  %v1428 = vpop.f32.mrf.mxu0
  %v1429 = vadd.f32 0.0, %v1428
  %1430 = vmatmul.f32.gmra.mxu0 %v1409
  %v1431 = vpop.f32.mrf.mxu0
  %v1432 = vadd.f32 0.0, %v1431
  %1433 = vdwg.mxu0
  %v1434 = vadd.f32 %v1380, %v1429
  %v1435 = vadd.f32 %v1381, %v1432
  %1436 = vmatpush.msra.mxu0 0.0
  %1437 = vmatpush.msra.mxu0 0.0
  %1438 = vmatpush.msra.mxu0 0.0
  %1439 = vmatpush.msra.mxu0 0.0
  %1440 = vmatpush.msra.mxu0 0.0
  %1441 = vmatpush.msra.mxu0 0.0
  %1442 = vmatpush.msra.mxu0 0.0
  %1443 = vmatpush.msra.mxu0 0.0
  %1444 = vmatpush.msra.mxu0 %v1091
  %1445 = vmatpush.msra.mxu0 %v1090
  %1446 = vmatpush.msra.mxu0 %v1089
  %1447 = vmatpush.msra.mxu0 %v1088
  %1448 = vmatpush.msra.mxu0 %v1087
  %1449 = vmatpush.msra.mxu0 %v1086
  %1450 = vmatpush.msra.mxu0 %v1085
  %1451 = vmatpush.msra.mxu0 %v1084
  %1452 = vmatmul.f32.gmra.mxu0 %v1406
  %v1453 = vpop.f32.mrf.mxu0
  %v1454 = vadd.f32 0.0, %v1453
  %1455 = vmatmul.f32.gmra.mxu0 %v1409
  %v1456 = vpop.f32.mrf.mxu0
  %v1457 = vadd.f32 0.0, %v1456
  %1458 = vdwg.mxu0
  %v1459 = vadd.f32 %v1434, %v1454
  %v1460 = vadd.f32 %v1435, %v1457
  %1461 = vmatpush.msra.mxu0 0.0
  %1462 = vmatpush.msra.mxu0 0.0
  %1463 = vmatpush.msra.mxu0 0.0
  %1464 = vmatpush.msra.mxu0 0.0
  %1465 = vmatpush.msra.mxu0 0.0
  %1466 = vmatpush.msra.mxu0 0.0
  %1467 = vmatpush.msra.mxu0 0.0
  %1468 = vmatpush.msra.mxu0 0.0
  %1469 = vmatpush.msra.mxu0 %v1125
  %1470 = vmatpush.msra.mxu0 %v1124
  %1471 = vmatpush.msra.mxu0 %v1123
  %1472 = vmatpush.msra.mxu0 %v1122
  %1473 = vmatpush.msra.mxu0 %v1121
  %1474 = vmatpush.msra.mxu0 %v1120
  %1475 = vmatpush.msra.mxu0 %v1119
  %1476 = vmatpush.msra.mxu0 %v1118
  %1477 = vmatmul.f32.gmra.mxu0 %v1406
  %v1478 = vpop.f32.mrf.mxu0
  %v1479 = vadd.f32 0.0, %v1478
  %1480 = vmatmul.f32.gmra.mxu0 %v1409
  %v1481 = vpop.f32.mrf.mxu0
  %v1482 = vadd.f32 0.0, %v1481
  %1483 = vdwg.mxu0
  %v1484 = vadd.f32 %v1459, %v1479
  %v1485 = vadd.f32 %v1460, %v1482
  %1486 = vmatpush.msra.mxu0 0.0
  %1487 = vmatpush.msra.mxu0 0.0
  %1488 = vmatpush.msra.mxu0 0.0
  %1489 = vmatpush.msra.mxu0 0.0
  %1490 = vmatpush.msra.mxu0 0.0
  %1491 = vmatpush.msra.mxu0 0.0
  %1492 = vmatpush.msra.mxu0 0.0
  %1493 = vmatpush.msra.mxu0 0.0
  %1494 = vmatpush.msra.mxu0 0.0
  %1495 = vmatpush.msra.mxu0 0.0
  %1496 = vmatpush.msra.mxu0 0.0
  %1497 = vmatpush.msra.mxu0 0.0
  %1498 = vmatpush.msra.mxu0 0.0
  %1499 = vmatpush.msra.mxu0 0.0
  %1500 = vmatpush.msra.mxu0 %v892
  %1501 = vmatpush.msra.mxu0 %v891
  %1502 = vmatmul.f32.gmra.mxu0 %v318
  %v1503 = vpop.f32.mrf.mxu0
  %v1504 = vadd.f32 0.0, %v1503
  %1505 = vmatmul.f32.gmra.mxu0 %v321
  %v1506 = vpop.f32.mrf.mxu0
  %v1507 = vadd.f32 0.0, %v1506
  %1508 = vdwg.mxu0
  %v1510 = vsel %vm93, %v1504, 0
  %v1513 = vsel %vm93, %v1507, 0
  %1515 = vmatpush.msra.mxu0 0.0
  %1516 = vmatpush.msra.mxu0 0.0
  %1517 = vmatpush.msra.mxu0 0.0
  %1518 = vmatpush.msra.mxu0 0.0
  %1519 = vmatpush.msra.mxu0 0.0
  %1520 = vmatpush.msra.mxu0 0.0
  %1521 = vmatpush.msra.mxu0 0.0
  %1522 = vmatpush.msra.mxu0 0.0
  %1523 = vmatpush.msra.mxu0 %v1182
  %1524 = vmatpush.msra.mxu0 %v1181
  %1525 = vmatpush.msra.mxu0 %v1180
  %1526 = vmatpush.msra.mxu0 %v1179
  %1527 = vmatpush.msra.mxu0 %v1178
  %1528 = vmatpush.msra.mxu0 %v1177
  %1529 = vmatpush.msra.mxu0 %v1176
  %1530 = vmatpush.msra.mxu0 %v1175
  %1531 = vmatmul.f32.gmra.mxu0 %v1510
  %v1532 = vpop.f32.mrf.mxu0
  %v1533 = vadd.f32 0.0, %v1532
  %1534 = vmatmul.f32.gmra.mxu0 %v1513
  %v1535 = vpop.f32.mrf.mxu0
  %v1536 = vadd.f32 0.0, %v1535
  %1537 = vdwg.mxu0
  %v1538 = vadd.f32 %v1484, %v1533
  %v1539 = vadd.f32 %v1485, %v1536
  %1540 = vmatpush.msra.mxu0 0.0
  %1541 = vmatpush.msra.mxu0 0.0
  %1542 = vmatpush.msra.mxu0 0.0
  %1543 = vmatpush.msra.mxu0 0.0
  %1544 = vmatpush.msra.mxu0 0.0
  %1545 = vmatpush.msra.mxu0 0.0
  %1546 = vmatpush.msra.mxu0 0.0
  %1547 = vmatpush.msra.mxu0 0.0
  %1548 = vmatpush.msra.mxu0 %v1222
  %1549 = vmatpush.msra.mxu0 %v1221
  %1550 = vmatpush.msra.mxu0 %v1220
  %1551 = vmatpush.msra.mxu0 %v1219
  %1552 = vmatpush.msra.mxu0 %v1218
  %1553 = vmatpush.msra.mxu0 %v1217
  %1554 = vmatpush.msra.mxu0 %v1216
  %1555 = vmatpush.msra.mxu0 %v1215
  %1556 = vmatmul.f32.gmra.mxu0 %v1510
  %v1557 = vpop.f32.mrf.mxu0
  %v1558 = vadd.f32 0.0, %v1557
  %1559 = vmatmul.f32.gmra.mxu0 %v1513
  %v1560 = vpop.f32.mrf.mxu0
  %v1561 = vadd.f32 0.0, %v1560
  %1562 = vdwg.mxu0
  %v1563 = vadd.f32 %v1538, %v1558
  %v1564 = vadd.f32 %v1539, %v1561
  %1565 = vmatpush.msra.mxu0 0.0
  %1566 = vmatpush.msra.mxu0 0.0
  %1567 = vmatpush.msra.mxu0 0.0
  %1568 = vmatpush.msra.mxu0 0.0
  %1569 = vmatpush.msra.mxu0 0.0
  %1570 = vmatpush.msra.mxu0 0.0
  %1571 = vmatpush.msra.mxu0 0.0
  %1572 = vmatpush.msra.mxu0 0.0
  %1573 = vmatpush.msra.mxu0 %v1256
  %1574 = vmatpush.msra.mxu0 %v1255
  %1575 = vmatpush.msra.mxu0 %v1254
  %1576 = vmatpush.msra.mxu0 %v1253
  %1577 = vmatpush.msra.mxu0 %v1252
  %1578 = vmatpush.msra.mxu0 %v1251
  %1579 = vmatpush.msra.mxu0 %v1250
  %1580 = vmatpush.msra.mxu0 %v1249
  %1581 = vmatmul.f32.gmra.mxu0 %v1510
  %v1582 = vpop.f32.mrf.mxu0
  %v1583 = vadd.f32 0.0, %v1582
  %1584 = vmatmul.f32.gmra.mxu0 %v1513
  %v1585 = vpop.f32.mrf.mxu0
  %v1586 = vadd.f32 0.0, %v1585
  %1587 = vdwg.mxu0
  %v1588 = vadd.f32 %v1563, %v1583
  %v1589 = vadd.f32 %v1564, %v1586
  %v1590 = vsel %vm93, %v1280, 0.0
  %v1591 = vsel %vm93, %v1281, 0.0
  %v1592 = vadd.f32 %v1590, %v1591
  %v1593 = vrot.slane %v1592, 4
  %v1594 = vadd.f32 %v1592, %v1593
  %v1595 = vrot.slane %v1594, 2
  %v1596 = vadd.f32 %v1594, %v1595
  %v1597 = vrot.slane %v1596, 1
  %v1598 = vadd.f32 %v1596, %v1597
  %v1599 = vadd.f32 %v1598, 0.0
  %v1600 = vmul.f32 %v1280, %v1280
  %v1601 = vmul.f32 %v1281, %v1281
  %v1602 = vsel %vm93, %v1600, 0.0
  %v1603 = vsel %vm93, %v1601, 0.0
  %v1604 = vadd.f32 %v1602, %v1603
  %v1605 = vrot.slane %v1604, 4
  %v1606 = vadd.f32 %v1604, %v1605
  %v1607 = vrot.slane %v1606, 2
  %v1608 = vadd.f32 %v1606, %v1607
  %v1609 = vrot.slane %v1608, 1
  %v1610 = vadd.f32 %v1608, %v1609
  %v1611 = vadd.f32 %v1610, 0.0
  %v1612 = vsel %vm93, %v1588, 0.0
  %v1613 = vsel %vm93, %v1589, 0.0
  %v1614 = vadd.f32 %v1612, %v1613
  %v1615 = vrot.slane %v1614, 4
  %v1616 = vadd.f32 %v1614, %v1615
  %v1617 = vrot.slane %v1616, 2
  %v1618 = vadd.f32 %v1616, %v1617
  %v1619 = vrot.slane %v1618, 1
  %v1620 = vadd.f32 %v1618, %v1619
  %v1621 = vadd.f32 %v1599, %v1620
  %v1622 = vmul.f32 %v1588, %v1588
  %v1623 = vmul.f32 %v1589, %v1589
  %v1624 = vsel %vm93, %v1622, 0.0
  %v1625 = vsel %vm93, %v1623, 0.0
  %v1626 = vadd.f32 %v1624, %v1625
  %v1627 = vrot.slane %v1626, 4
  %v1628 = vadd.f32 %v1626, %v1627
  %v1629 = vrot.slane %v1628, 2
  %v1630 = vadd.f32 %v1628, %v1629
  %v1631 = vrot.slane %v1630, 1
  %v1632 = vadd.f32 %v1630, %v1631
  %v1633 = vadd.f32 %v1611, %v1632
  %v1635 = vsel %vm93, %v1621, 0
  %1637 = vmatpush.msra.mxu0 0.0
  %1638 = vmatpush.msra.mxu0 0.0
  %1639 = vmatpush.msra.mxu0 0.0
  %1640 = vmatpush.msra.mxu0 0.0
  %1641 = vmatpush.msra.mxu0 0.0
  %1642 = vmatpush.msra.mxu0 0.0
  %1643 = vmatpush.msra.mxu0 0.0
  %1644 = vmatpush.msra.mxu0 0.0
  %1645 = vmatpush.msra.mxu0 %v814
  %1646 = vmatpush.msra.mxu0 %v813
  %1647 = vmatpush.msra.mxu0 %v812
  %1648 = vmatpush.msra.mxu0 %v811
  %1649 = vmatpush.msra.mxu0 %v810
  %1650 = vmatpush.msra.mxu0 %v809
  %1651 = vmatpush.msra.mxu0 %v808
  %1652 = vmatpush.msra.mxu0 %v807
  %1653 = vmatmul.f32.gmra.mxu0 %v1635
  %v1654 = vpop.f32.mrf.mxu0
  %v1655 = vadd.f32 0.0, %v1654
  %1656 = vdwg.mxu0
  %v1658 = vsel %vm93, %v1633, 0
  %1660 = vmatpush.msra.mxu0 0.0
  %1661 = vmatpush.msra.mxu0 0.0
  %1662 = vmatpush.msra.mxu0 0.0
  %1663 = vmatpush.msra.mxu0 0.0
  %1664 = vmatpush.msra.mxu0 0.0
  %1665 = vmatpush.msra.mxu0 0.0
  %1666 = vmatpush.msra.mxu0 0.0
  %1667 = vmatpush.msra.mxu0 0.0
  %1668 = vmatpush.msra.mxu0 %v814
  %1669 = vmatpush.msra.mxu0 %v813
  %1670 = vmatpush.msra.mxu0 %v812
  %1671 = vmatpush.msra.mxu0 %v811
  %1672 = vmatpush.msra.mxu0 %v810
  %1673 = vmatpush.msra.mxu0 %v809
  %1674 = vmatpush.msra.mxu0 %v808
  %1675 = vmatpush.msra.mxu0 %v807
  %1676 = vmatmul.f32.gmra.mxu0 %v1658
  %v1677 = vpop.f32.mrf.mxu0
  %v1678 = vadd.f32 0.0, %v1677
  %1679 = vdwg.mxu0
  %v1680 = vmul.f32 %v1655, %v1655
  %v1681 = vsub.f32 %v1678, %v1680
  %v1682 = vld [vmem:[%s2 + $0x2] sm:$0x1]
  %v1683 = vld [vmem:[%s2 + $0x3] sm:$0x1]
  %v1684 = vadd.f32 %v1681, 1e-05
  %v1685 = vrsqrt.pop %v1684
  %v1686 = vmul.f32 %v1685, %v1684
  %v1687 = vmul.f32 %v1686, %v1685
  %v1688 = vmul.f32 0.5, %v1687
  %v1689 = vsub.f32 1.5, %v1688
  %v1690 = vmul.f32 %v1685, %v1689
  %vm1691 = vweird.f32 %v1684
  %vm1692 = vweird.f32 %v1685
  %vm1693 = vmor %vm1691, %vm1692
  %v1694 = vsel %vm1693, %v1685, %v1690
  %v1695 = vmul.f32 %v1682, %v1694
  %v1696 = vmul.f32 %v1655, %v1695
  %v1697 = vsub.f32 %v1683, %v1696
  %v1698 = vperm.slane %v1695, 0
  %v1699 = vmul.f32 %v1280, %v1698
  %v1700 = vmul.f32 %v1281, %v1698
  %v1701 = vperm.slane %v1697, 0
  %v1702 = vadd.f32 %v1699, %v1701
  %v1703 = vadd.f32 %v1700, %v1701
  %v1704 = vmax.f32 %v1702, 0.0
  %v1705 = vmax.f32 %v1703, 0.0
  %v1706 = vmul.f32 %v1588, %v1698
  %v1707 = vmul.f32 %v1589, %v1698
  %v1708 = vadd.f32 %v1706, %v1701
  %v1709 = vadd.f32 %v1707, %v1701
  %v1710 = vmax.f32 %v1708, 0.0
  %v1711 = vmax.f32 %v1709, 0.0
  %1712 = vst.msk [vmem:[%s3] sm:$0xff] %vm93, %v1704
  %1713 = vst.msk [vmem:[%s3 + $0x8] sm:$0xff] %vm93, %v1705
  %s1714 = scalar_lea.vmem %s3, 16
  %1715 = vst.msk [vmem:[%s1714] sm:$0xff] %vm93, %v1710
  %1716 = vst.msk [vmem:[%s1714 + $0x8] sm:$0xff] %vm93, %v1711
  // Predicated region
  $region14: #{tinyconv_forward.1} parent=0 // pred_check
    _
  $region15: #{tinyconv_forward.1} parent=0 // pred_check_branch
    %1718 = sbr.rel (0) target = $region17
  $region16: #{tinyconv_forward.1} parent=0 // pred_region
    _
  $region17: #{tinyconv_forward.1} parent=0 // pred_fallthru
    _
  // Predicated region
  $region18: #{tinyconv_forward.1} parent=0 // pred_check
    _
  $region19: #{tinyconv_forward.1} parent=0 // pred_check_branch
    %1720 = sbr.rel (0) target = $region21
  $region20: #{tinyconv_forward.1} parent=0 // pred_region
    _
  $region21: #{tinyconv_forward.1} parent=0 // pred_fallthru
    _

</llo_original>
